<compile_context>
chip_gen: v7x
topology: tpu7x:2x2x1
jax: 0.10.0
libtpu: 0.0.40
codegen_flags: <defaults>
</compile_context>

<pallas_src>
import math
from functools import partial

import jax
import jax.numpy as jnp
from jax import lax
from jax.experimental import pallas as pl
from jax.experimental.pallas import tpu as pltpu


def _mha_kernel(q_ref, k_ref, v_ref, mask_ref,
                wqkv_ref, bqkv_ref, wo_ref, bo_ref,
                o_ref, *, n_head):
    D = wo_ref.shape[0]
    d_head = D // n_head

    # One batch element per grid step.
    qb = q_ref[0].astype(jnp.bfloat16)          # (L, D) bf16 MXU operand
    kb = k_ref[0].astype(jnp.bfloat16)
    vb = v_ref[0].astype(jnp.bfloat16)
    wqkv = wqkv_ref[...].astype(jnp.bfloat16)   # (D, 3D)
    bqkv = bqkv_ref[...]                        # (1, 3D) f32

    # Fused projection weights; bf16 operands, f32 MXU accumulation.
    # wq / bq columns already carry the 1/sqrt(d_head) scale (folded on host).
    qp = (jnp.dot(qb, wqkv[:, 0:D], preferred_element_type=jnp.float32)
          + bqkv[:, 0:D]).astype(jnp.bfloat16)
    kp = (jnp.dot(kb, wqkv[:, D:2 * D], preferred_element_type=jnp.float32)
          + bqkv[:, D:2 * D]).astype(jnp.bfloat16)
    vp = (jnp.dot(vb, wqkv[:, 2 * D:3 * D], preferred_element_type=jnp.float32)
          + bqkv[:, 2 * D:3 * D]).astype(jnp.bfloat16)

    # Mask comparison computed once per batch (hoisted out of the head loop).
    masked = mask_ref[0, 0] == 0                # (L, L) bool

    # One bf16 cast of the whole output-projection weight; sliced per head.
    wo = wo_ref[...].astype(jnp.bfloat16)       # (D, D)

    L = qp.shape[0]
    # Fold the output bias into the accumulator init (saves the final add).
    out_acc = jnp.broadcast_to(bo_ref[...], (L, D)).astype(jnp.float32)

    contract_last = (((1,), (1,)), ((), ()))    # contract last dims, no batch dims

    for h in range(n_head):                     # static unrolled loop over heads
        lo = h * d_head
        hi = lo + d_head
        qh = qp[:, lo:hi]                       # (L, dh)
        kh = kp[:, lo:hi]
        vh = vp[:, lo:hi]

        # scores = qh @ kh^T without materializing kh.T  (f32 accumulation)
        scores = lax.dot_general(qh, kh, contract_last,
                                 preferred_element_type=jnp.float32)   # (L, L)
        scores = jnp.where(masked, -10000.0, scores)

        # numerically stable softmax over keys, f32 math
        scores = scores - jnp.max(scores, axis=-1, keepdims=True)
        p = jnp.exp(scores)
        p = p * pl.reciprocal(jnp.sum(p, axis=-1, keepdims=True), approx=True)

        head_out = jnp.dot(p.astype(jnp.bfloat16), vh,
                           preferred_element_type=jnp.float32)          # (L, dh)

        # Accumulate the output projection per head: head_out @ wo[lo:hi, :]
        # (sublane slice of wo; avoids a lane-wise concat of head outputs).
        out_acc = out_acc + jnp.dot(head_out.astype(jnp.bfloat16), wo[lo:hi, :],
                                    preferred_element_type=jnp.float32)

    o_ref[0] = out_acc.astype(o_ref.dtype)


def multi_head_attention(q, k, v, mask, params, n_head):
    """q, k, v: (B, L, D) f32; mask: (B, 1, L, L) int32 (1 = keep, 0 = masked)."""
    B, L, D = q.shape
    wq, bq, wk, bk, wv, bv, wo, bo = params
    scale = 1.0 / math.sqrt(D // n_head)

    # Host-side fusion: one (D, 3D) weight / (1, 3D) bias block, scale folded
    # into the q columns.
    wqkv = jnp.concatenate([wq * scale, wk, wv], axis=1)   # (D, 3D)
    bqkv = jnp.concatenate([bq * scale, bk, bv], axis=1)   # (1, 3D)

    qkv_spec = pl.BlockSpec((1, L, D), lambda b: (b, 0, 0))
    mask_spec = pl.BlockSpec((1, 1, L, L), lambda b: (b, 0, 0, 0))
    wqkv_spec = pl.BlockSpec((D, 3 * D), lambda b: (0, 0))
    bqkv_spec = pl.BlockSpec((1, 3 * D), lambda b: (0, 0))
    wo_spec = pl.BlockSpec((D, D), lambda b: (0, 0))
    bo_spec = pl.BlockSpec((1, D), lambda b: (0, 0))

    grid_spec = pltpu.PrefetchScalarGridSpec(
        num_scalar_prefetch=0,
        grid=(B,),
        in_specs=[qkv_spec, qkv_spec, qkv_spec, mask_spec,
                  wqkv_spec, bqkv_spec, wo_spec, bo_spec],
        out_specs=pl.BlockSpec((1, L, D), lambda b: (b, 0, 0)),
    )

    return pl.pallas_call(
        partial(_mha_kernel, n_head=n_head),
        out_shape=jax.ShapeDtypeStruct((B, L, D), jnp.float32),
        grid_spec=grid_spec,
        compiler_params=pltpu.CompilerParams(
            dimension_semantics=("parallel",),
            # Toy shapes fit easily; for real L/D re-derive this per generation
            # (v7x has 64 MiB physical VMEM) together with sequence tiling.
            vmem_limit_bytes=32 * 1024 * 1024,
        ),
    )(q, k, v, mask, wqkv, bqkv, wo, bo)


def _reference_mha(q, k, v, mask, params, n_head):
    """Pure-JAX f32 reference (original module semantics) for sanity checking."""
    wq, bq, wk, bk, wv, bv, wo, bo = params
    B, L, D = q.shape
    dh = D // n_head

    def split(x):  # (B, L, D) -> (B, H, L, dh)
        return x.reshape(B, L, n_head, dh).transpose(0, 2, 1, 3)

    qp = split(q @ wq + bq)
    kp = split(k @ wk + bk)
    vp = split(v @ wv + bv)
    scores = jnp.einsum("bhqd,bhkd->bhqk", qp, kp) / math.sqrt(dh)
    scores = jnp.where(mask == 0, -10000.0, scores)
    attn = jax.nn.softmax(scores, axis=-1)
    out = jnp.einsum("bhqk,bhkd->bhqd", attn, vp)
    out = out.transpose(0, 2, 1, 3).reshape(B, L, D)
    return out @ wo + bo


if __name__ == "__main__":
    B, L, D, H = 2, 8, 32, 8

    key = jax.random.PRNGKey(0)
    keys = jax.random.split(key, 12)

    def lin(kw, kb, d_in, d_out):
        bound = 1.0 / math.sqrt(d_in)
        w = jax.random.uniform(kw, (d_in, d_out), jnp.float32, -bound, bound)
        b = jax.random.uniform(kb, (1, d_out), jnp.float32, -bound, bound)
        return w, b

    wq, bq = lin(keys[0], keys[1], D, D)
    wk, bk = lin(keys[2], keys[3], D, D)
    wv, bv = lin(keys[4], keys[5], D, D)
    wo, bo = lin(keys[6], keys[7], D, D)
    params = (wq, bq, wk, bk, wv, bv, wo, bo)

    q = jax.random.normal(keys[8], (B, L, D), jnp.float32)
    k = jax.random.normal(keys[9], (B, L, D), jnp.float32)
    v = jax.random.normal(keys[10], (B, L, D), jnp.float32)
    # causal mask: 1 = keep, 0 = masked
    mask = jnp.tril(jnp.ones((L, L), jnp.int32))[None, None].repeat(B, axis=0)

    out = multi_head_attention(q, k, v, mask, params, H)
    out = jax.block_until_ready(out)

    ref = _reference_mha(q, k, v, mask, params, H)
    assert out.shape == (B, L, D)
    # Tolerance reflects bf16 MXU operands (f32 accumulation) + approx reciprocal
    # in the kernel vs. the pure-f32 reference.
    assert jnp.allclose(out, ref, atol=4e-2, rtol=4e-2), "mismatch vs reference"

    print("KERNEL_OK")
</pallas_src>

<mosaic_0001>
module attributes {stable_mosaic.version = 11 : i64} {
  func.func @_mha_kernel(%arg0: i32, %arg1: memref<1x8x32xf32, #tpu.memory_space<vmem>>, %arg2: memref<1x8x32xf32, #tpu.memory_space<vmem>>, %arg3: memref<1x8x32xf32, #tpu.memory_space<vmem>>, %arg4: memref<1x1x8x8xi32, #tpu.memory_space<vmem>>, %arg5: memref<32x96xf32, #tpu.memory_space<vmem>>, %arg6: memref<1x96xf32, #tpu.memory_space<vmem>>, %arg7: memref<32x32xf32, #tpu.memory_space<vmem>>, %arg8: memref<1x32xf32, #tpu.memory_space<vmem>>, %arg9: memref<1x8x32xf32, #tpu.memory_space<vmem>>) attributes {dimension_semantics = [#tpu.dimension_semantics<parallel>], iteration_bounds = array<i64: 2>, scalar_prefetch = 0 : i64, scratch_operands = 0 : i64, tpu.core_type = #tpu.core_type<tc>, window_params = [{transform_indices = @transform_0, window_bounds = array<i64: 1, 8, 32>}, {transform_indices = @transform_1, window_bounds = array<i64: 1, 8, 32>}, {transform_indices = @transform_2, window_bounds = array<i64: 1, 8, 32>}, {transform_indices = @transform_3, window_bounds = array<i64: 1, 1, 8, 8>}, {pipeline_mode = #tpu.pipeline_mode<synchronous>, transform_indices = @transform_4, window_bounds = array<i64: 32, 96>}, {pipeline_mode = #tpu.pipeline_mode<synchronous>, transform_indices = @transform_5, window_bounds = array<i64: 1, 96>}, {pipeline_mode = #tpu.pipeline_mode<synchronous>, transform_indices = @transform_6, window_bounds = array<i64: 32, 32>}, {pipeline_mode = #tpu.pipeline_mode<synchronous>, transform_indices = @transform_7, window_bounds = array<i64: 1, 32>}, {transform_indices = @transform_8, window_bounds = array<i64: 1, 8, 32>}]} {
    %c0 = arith.constant 0 : index
    %c0_0 = arith.constant 0 : index
    %c0_1 = arith.constant 0 : index
    %0 = vector.load %arg1[%c0, %c0_0, %c0_1] : memref<1x8x32xf32, #tpu.memory_space<vmem>>, vector<1x8x32xf32>
    %1 = vector.shape_cast %0 : vector<1x8x32xf32> to vector<8x32xf32>
    %2 = arith.truncf %1 : vector<8x32xf32> to vector<8x32xbf16>
    %c0_2 = arith.constant 0 : index
    %c0_3 = arith.constant 0 : index
    %c0_4 = arith.constant 0 : index
    %3 = vector.load %arg2[%c0_2, %c0_3, %c0_4] : memref<1x8x32xf32, #tpu.memory_space<vmem>>, vector<1x8x32xf32>
    %4 = vector.shape_cast %3 : vector<1x8x32xf32> to vector<8x32xf32>
    %5 = arith.truncf %4 : vector<8x32xf32> to vector<8x32xbf16>
    %c0_5 = arith.constant 0 : index
    %c0_6 = arith.constant 0 : index
    %c0_7 = arith.constant 0 : index
    %6 = vector.load %arg3[%c0_5, %c0_6, %c0_7] : memref<1x8x32xf32, #tpu.memory_space<vmem>>, vector<1x8x32xf32>
    %7 = vector.shape_cast %6 : vector<1x8x32xf32> to vector<8x32xf32>
    %8 = arith.truncf %7 : vector<8x32xf32> to vector<8x32xbf16>
    %c0_8 = arith.constant 0 : index
    %c0_9 = arith.constant 0 : index
    %9 = vector.load %arg5[%c0_8, %c0_9] : memref<32x96xf32, #tpu.memory_space<vmem>>, vector<32x96xf32>
    %10 = arith.truncf %9 : vector<32x96xf32> to vector<32x96xbf16>
    %c0_10 = arith.constant 0 : index
    %c0_11 = arith.constant 0 : index
    %11 = vector.load %arg6[%c0_10, %c0_11] : memref<1x96xf32, #tpu.memory_space<vmem>>, vector<1x96xf32>
    %12 = vector.extract_strided_slice %10 {offsets = [0, 0], sizes = [32, 32], strides = [1, 1]} : vector<32x96xbf16> to vector<32x32xbf16>
    %cst = arith.constant dense<0.000000e+00> : vector<8x32xf32>
    %13 = tpu.matmul %2, %12, %cst {dimension_numbers = #tpu.dot_dimension_numbers<[1], [0], [0], [1], [0, 0, 1, 1], [], []>} : vector<8x32xbf16>, vector<32x32xbf16>, vector<8x32xf32> -> vector<8x32xf32>
    %14 = vector.extract_strided_slice %11 {offsets = [0, 0], sizes = [1, 32], strides = [1, 1]} : vector<1x96xf32> to vector<1x32xf32>
    %15 = vector.broadcast %14 : vector<1x32xf32> to vector<8x32xf32>
    %16 = arith.addf %13, %15 : vector<8x32xf32>
    %17 = arith.truncf %16 : vector<8x32xf32> to vector<8x32xbf16>
    %18 = vector.extract_strided_slice %10 {offsets = [0, 32], sizes = [32, 32], strides = [1, 1]} : vector<32x96xbf16> to vector<32x32xbf16>
    %cst_12 = arith.constant dense<0.000000e+00> : vector<8x32xf32>
    %19 = tpu.matmul %5, %18, %cst_12 {dimension_numbers = #tpu.dot_dimension_numbers<[1], [0], [0], [1], [0, 0, 1, 1], [], []>} : vector<8x32xbf16>, vector<32x32xbf16>, vector<8x32xf32> -> vector<8x32xf32>
    %20 = vector.extract_strided_slice %11 {offsets = [0, 32], sizes = [1, 32], strides = [1, 1]} : vector<1x96xf32> to vector<1x32xf32>
    %21 = vector.broadcast %20 : vector<1x32xf32> to vector<8x32xf32>
    %22 = arith.addf %19, %21 : vector<8x32xf32>
    %23 = arith.truncf %22 : vector<8x32xf32> to vector<8x32xbf16>
    %24 = vector.extract_strided_slice %10 {offsets = [0, 64], sizes = [32, 32], strides = [1, 1]} : vector<32x96xbf16> to vector<32x32xbf16>
    %cst_13 = arith.constant dense<0.000000e+00> : vector<8x32xf32>
    %25 = tpu.matmul %8, %24, %cst_13 {dimension_numbers = #tpu.dot_dimension_numbers<[1], [0], [0], [1], [0, 0, 1, 1], [], []>} : vector<8x32xbf16>, vector<32x32xbf16>, vector<8x32xf32> -> vector<8x32xf32>
    %26 = vector.extract_strided_slice %11 {offsets = [0, 64], sizes = [1, 32], strides = [1, 1]} : vector<1x96xf32> to vector<1x32xf32>
    %27 = vector.broadcast %26 : vector<1x32xf32> to vector<8x32xf32>
    %28 = arith.addf %25, %27 : vector<8x32xf32>
    %29 = arith.truncf %28 : vector<8x32xf32> to vector<8x32xbf16>
    %c0_14 = arith.constant 0 : index
    %c0_15 = arith.constant 0 : index
    %c0_16 = arith.constant 0 : index
    %c0_17 = arith.constant 0 : index
    %30 = vector.load %arg4[%c0_14, %c0_15, %c0_16, %c0_17] : memref<1x1x8x8xi32, #tpu.memory_space<vmem>>, vector<1x1x8x8xi32>
    %31 = vector.shape_cast %30 : vector<1x1x8x8xi32> to vector<8x8xi32>
    %c0_i32 = arith.constant 0 : i32
    %32 = vector.broadcast %c0_i32 : i32 to vector<8x8xi32>
    %33 = arith.cmpi eq, %31, %32 : vector<8x8xi32>
    %c0_18 = arith.constant 0 : index
    %c0_19 = arith.constant 0 : index
    %34 = vector.load %arg7[%c0_18, %c0_19] : memref<32x32xf32, #tpu.memory_space<vmem>>, vector<32x32xf32>
    %35 = arith.truncf %34 : vector<32x32xf32> to vector<32x32xbf16>
    %c0_20 = arith.constant 0 : index
    %c0_21 = arith.constant 0 : index
    %36 = vector.load %arg8[%c0_20, %c0_21] : memref<1x32xf32, #tpu.memory_space<vmem>>, vector<1x32xf32>
    %37 = vector.shape_cast %36 : vector<1x32xf32> to vector<1x32xf32>
    %38 = vector.broadcast %37 : vector<1x32xf32> to vector<8x32xf32>
    %39 = vector.extract_strided_slice %17 {offsets = [0, 0], sizes = [8, 4], strides = [1, 1]} : vector<8x32xbf16> to vector<8x4xbf16>
    %40 = vector.extract_strided_slice %23 {offsets = [0, 0], sizes = [8, 4], strides = [1, 1]} : vector<8x32xbf16> to vector<8x4xbf16>
    %41 = vector.extract_strided_slice %29 {offsets = [0, 0], sizes = [8, 4], strides = [1, 1]} : vector<8x32xbf16> to vector<8x4xbf16>
    %cst_22 = arith.constant dense<0.000000e+00> : vector<8x8xf32>
    %42 = tpu.matmul %39, %40, %cst_22 {dimension_numbers = #tpu.dot_dimension_numbers<[1], [1], [0], [0], [0, 0, 1, 0], [], []>} : vector<8x4xbf16>, vector<8x4xbf16>, vector<8x8xf32> -> vector<8x8xf32>
    %cst_23 = arith.constant -1.000000e+04 : f32
    %43 = vector.broadcast %cst_23 : f32 to vector<8x8xf32>
    %44 = arith.select %33, %43, %42 : vector<8x8xi1>, vector<8x8xf32>
    %cst_24 = arith.constant dense<0xFF800000> : vector<8xf32>
    %45 = vector.multi_reduction <maximumf>, %44, %cst_24 [1] : vector<8x8xf32> to vector<8xf32>
    %46 = vector.shape_cast %45 : vector<8xf32> to vector<8x1xf32>
    %47 = vector.broadcast %46 : vector<8x1xf32> to vector<8x8xf32>
    %48 = arith.subf %44, %47 : vector<8x8xf32>
    %49 = math.exp %48 : vector<8x8xf32>
    %cst_25 = arith.constant dense<0.000000e+00> : vector<8xf32>
    %50 = vector.multi_reduction <add>, %49, %cst_25 [1] : vector<8x8xf32> to vector<8xf32>
    %51 = vector.shape_cast %50 : vector<8xf32> to vector<8x1xf32>
    %52 = tpu.reciprocal %51 {approx = true} : vector<8x1xf32> -> vector<8x1xf32>
    %53 = vector.broadcast %52 : vector<8x1xf32> to vector<8x8xf32>
    %54 = arith.mulf %49, %53 : vector<8x8xf32>
    %55 = arith.truncf %54 : vector<8x8xf32> to vector<8x8xbf16>
    %cst_26 = arith.constant dense<0.000000e+00> : vector<8x4xf32>
    %56 = tpu.matmul %55, %41, %cst_26 {dimension_numbers = #tpu.dot_dimension_numbers<[1], [0], [0], [1], [0, 0, 1, 1], [], []>} : vector<8x8xbf16>, vector<8x4xbf16>, vector<8x4xf32> -> vector<8x4xf32>
    %57 = arith.truncf %56 : vector<8x4xf32> to vector<8x4xbf16>
    %58 = vector.extract_strided_slice %35 {offsets = [0, 0], sizes = [4, 32], strides = [1, 1]} : vector<32x32xbf16> to vector<4x32xbf16>
    %cst_27 = arith.constant dense<0.000000e+00> : vector<8x32xf32>
    %59 = tpu.matmul %57, %58, %cst_27 {dimension_numbers = #tpu.dot_dimension_numbers<[1], [0], [0], [1], [0, 0, 1, 1], [], []>} : vector<8x4xbf16>, vector<4x32xbf16>, vector<8x32xf32> -> vector<8x32xf32>
    %60 = arith.addf %38, %59 : vector<8x32xf32>
    %61 = vector.extract_strided_slice %17 {offsets = [0, 4], sizes = [8, 4], strides = [1, 1]} : vector<8x32xbf16> to vector<8x4xbf16>
    %62 = vector.extract_strided_slice %23 {offsets = [0, 4], sizes = [8, 4], strides = [1, 1]} : vector<8x32xbf16> to vector<8x4xbf16>
    %63 = vector.extract_strided_slice %29 {offsets = [0, 4], sizes = [8, 4], strides = [1, 1]} : vector<8x32xbf16> to vector<8x4xbf16>
    %cst_28 = arith.constant dense<0.000000e+00> : vector<8x8xf32>
    %64 = tpu.matmul %61, %62, %cst_28 {dimension_numbers = #tpu.dot_dimension_numbers<[1], [1], [0], [0], [0, 0, 1, 0], [], []>} : vector<8x4xbf16>, vector<8x4xbf16>, vector<8x8xf32> -> vector<8x8xf32>
    %cst_29 = arith.constant -1.000000e+04 : f32
    %65 = vector.broadcast %cst_29 : f32 to vector<8x8xf32>
    %66 = arith.select %33, %65, %64 : vector<8x8xi1>, vector<8x8xf32>
    %cst_30 = arith.constant dense<0xFF800000> : vector<8xf32>
    %67 = vector.multi_reduction <maximumf>, %66, %cst_30 [1] : vector<8x8xf32> to vector<8xf32>
    %68 = vector.shape_cast %67 : vector<8xf32> to vector<8x1xf32>
    %69 = vector.broadcast %68 : vector<8x1xf32> to vector<8x8xf32>
    %70 = arith.subf %66, %69 : vector<8x8xf32>
    %71 = math.exp %70 : vector<8x8xf32>
    %cst_31 = arith.constant dense<0.000000e+00> : vector<8xf32>
    %72 = vector.multi_reduction <add>, %71, %cst_31 [1] : vector<8x8xf32> to vector<8xf32>
    %73 = vector.shape_cast %72 : vector<8xf32> to vector<8x1xf32>
    %74 = tpu.reciprocal %73 {approx = true} : vector<8x1xf32> -> vector<8x1xf32>
    %75 = vector.broadcast %74 : vector<8x1xf32> to vector<8x8xf32>
    %76 = arith.mulf %71, %75 : vector<8x8xf32>
    %77 = arith.truncf %76 : vector<8x8xf32> to vector<8x8xbf16>
    %cst_32 = arith.constant dense<0.000000e+00> : vector<8x4xf32>
    %78 = tpu.matmul %77, %63, %cst_32 {dimension_numbers = #tpu.dot_dimension_numbers<[1], [0], [0], [1], [0, 0, 1, 1], [], []>} : vector<8x8xbf16>, vector<8x4xbf16>, vector<8x4xf32> -> vector<8x4xf32>
    %79 = arith.truncf %78 : vector<8x4xf32> to vector<8x4xbf16>
    %80 = vector.extract_strided_slice %35 {offsets = [4, 0], sizes = [4, 32], strides = [1, 1]} : vector<32x32xbf16> to vector<4x32xbf16>
    %cst_33 = arith.constant dense<0.000000e+00> : vector<8x32xf32>
    %81 = tpu.matmul %79, %80, %cst_33 {dimension_numbers = #tpu.dot_dimension_numbers<[1], [0], [0], [1], [0, 0, 1, 1], [], []>} : vector<8x4xbf16>, vector<4x32xbf16>, vector<8x32xf32> -> vector<8x32xf32>
    %82 = arith.addf %60, %81 : vector<8x32xf32>
    %83 = vector.extract_strided_slice %17 {offsets = [0, 8], sizes = [8, 4], strides = [1, 1]} : vector<8x32xbf16> to vector<8x4xbf16>
    %84 = vector.extract_strided_slice %23 {offsets = [0, 8], sizes = [8, 4], strides = [1, 1]} : vector<8x32xbf16> to vector<8x4xbf16>
    %85 = vector.extract_strided_slice %29 {offsets = [0, 8], sizes = [8, 4], strides = [1, 1]} : vector<8x32xbf16> to vector<8x4xbf16>
    %cst_34 = arith.constant dense<0.000000e+00> : vector<8x8xf32>
    %86 = tpu.matmul %83, %84, %cst_34 {dimension_numbers = #tpu.dot_dimension_numbers<[1], [1], [0], [0], [0, 0, 1, 0], [], []>} : vector<8x4xbf16>, vector<8x4xbf16>, vector<8x8xf32> -> vector<8x8xf32>
    %cst_35 = arith.constant -1.000000e+04 : f32
    %87 = vector.broadcast %cst_35 : f32 to vector<8x8xf32>
    %88 = arith.select %33, %87, %86 : vector<8x8xi1>, vector<8x8xf32>
    %cst_36 = arith.constant dense<0xFF800000> : vector<8xf32>
    %89 = vector.multi_reduction <maximumf>, %88, %cst_36 [1] : vector<8x8xf32> to vector<8xf32>
    %90 = vector.shape_cast %89 : vector<8xf32> to vector<8x1xf32>
    %91 = vector.broadcast %90 : vector<8x1xf32> to vector<8x8xf32>
    %92 = arith.subf %88, %91 : vector<8x8xf32>
    %93 = math.exp %92 : vector<8x8xf32>
    %cst_37 = arith.constant dense<0.000000e+00> : vector<8xf32>
    %94 = vector.multi_reduction <add>, %93, %cst_37 [1] : vector<8x8xf32> to vector<8xf32>
    %95 = vector.shape_cast %94 : vector<8xf32> to vector<8x1xf32>
    %96 = tpu.reciprocal %95 {approx = true} : vector<8x1xf32> -> vector<8x1xf32>
    %97 = vector.broadcast %96 : vector<8x1xf32> to vector<8x8xf32>
    %98 = arith.mulf %93, %97 : vector<8x8xf32>
    %99 = arith.truncf %98 : vector<8x8xf32> to vector<8x8xbf16>
    %cst_38 = arith.constant dense<0.000000e+00> : vector<8x4xf32>
    %100 = tpu.matmul %99, %85, %cst_38 {dimension_numbers = #tpu.dot_dimension_numbers<[1], [0], [0], [1], [0, 0, 1, 1], [], []>} : vector<8x8xbf16>, vector<8x4xbf16>, vector<8x4xf32> -> vector<8x4xf32>
    %101 = arith.truncf %100 : vector<8x4xf32> to vector<8x4xbf16>
    %102 = vector.extract_strided_slice %35 {offsets = [8, 0], sizes = [4, 32], strides = [1, 1]} : vector<32x32xbf16> to vector<4x32xbf16>
    %cst_39 = arith.constant dense<0.000000e+00> : vector<8x32xf32>
    %103 = tpu.matmul %101, %102, %cst_39 {dimension_numbers = #tpu.dot_dimension_numbers<[1], [0], [0], [1], [0, 0, 1, 1], [], []>} : vector<8x4xbf16>, vector<4x32xbf16>, vector<8x32xf32> -> vector<8x32xf32>
    %104 = arith.addf %82, %103 : vector<8x32xf32>
    %105 = vector.extract_strided_slice %17 {offsets = [0, 12], sizes = [8, 4], strides = [1, 1]} : vector<8x32xbf16> to vector<8x4xbf16>
    %106 = vector.extract_strided_slice %23 {offsets = [0, 12], sizes = [8, 4], strides = [1, 1]} : vector<8x32xbf16> to vector<8x4xbf16>
    %107 = vector.extract_strided_slice %29 {offsets = [0, 12], sizes = [8, 4], strides = [1, 1]} : vector<8x32xbf16> to vector<8x4xbf16>
    %cst_40 = arith.constant dense<0.000000e+00> : vector<8x8xf32>
    %108 = tpu.matmul %105, %106, %cst_40 {dimension_numbers = #tpu.dot_dimension_numbers<[1], [1], [0], [0], [0, 0, 1, 0], [], []>} : vector<8x4xbf16>, vector<8x4xbf16>, vector<8x8xf32> -> vector<8x8xf32>
    %cst_41 = arith.constant -1.000000e+04 : f32
    %109 = vector.broadcast %cst_41 : f32 to vector<8x8xf32>
    %110 = arith.select %33, %109, %108 : vector<8x8xi1>, vector<8x8xf32>
    %cst_42 = arith.constant dense<0xFF800000> : vector<8xf32>
    %111 = vector.multi_reduction <maximumf>, %110, %cst_42 [1] : vector<8x8xf32> to vector<8xf32>
    %112 = vector.shape_cast %111 : vector<8xf32> to vector<8x1xf32>
    %113 = vector.broadcast %112 : vector<8x1xf32> to vector<8x8xf32>
    %114 = arith.subf %110, %113 : vector<8x8xf32>
    %115 = math.exp %114 : vector<8x8xf32>
    %cst_43 = arith.constant dense<0.000000e+00> : vector<8xf32>
    %116 = vector.multi_reduction <add>, %115, %cst_43 [1] : vector<8x8xf32> to vector<8xf32>
    %117 = vector.shape_cast %116 : vector<8xf32> to vector<8x1xf32>
    %118 = tpu.reciprocal %117 {approx = true} : vector<8x1xf32> -> vector<8x1xf32>
    %119 = vector.broadcast %118 : vector<8x1xf32> to vector<8x8xf32>
    %120 = arith.mulf %115, %119 : vector<8x8xf32>
    %121 = arith.truncf %120 : vector<8x8xf32> to vector<8x8xbf16>
    %cst_44 = arith.constant dense<0.000000e+00> : vector<8x4xf32>
    %122 = tpu.matmul %121, %107, %cst_44 {dimension_numbers = #tpu.dot_dimension_numbers<[1], [0], [0], [1], [0, 0, 1, 1], [], []>} : vector<8x8xbf16>, vector<8x4xbf16>, vector<8x4xf32> -> vector<8x4xf32>
    %123 = arith.truncf %122 : vector<8x4xf32> to vector<8x4xbf16>
    %124 = vector.extract_strided_slice %35 {offsets = [12, 0], sizes = [4, 32], strides = [1, 1]} : vector<32x32xbf16> to vector<4x32xbf16>
    %cst_45 = arith.constant dense<0.000000e+00> : vector<8x32xf32>
    %125 = tpu.matmul %123, %124, %cst_45 {dimension_numbers = #tpu.dot_dimension_numbers<[1], [0], [0], [1], [0, 0, 1, 1], [], []>} : vector<8x4xbf16>, vector<4x32xbf16>, vector<8x32xf32> -> vector<8x32xf32>
    %126 = arith.addf %104, %125 : vector<8x32xf32>
    %127 = vector.extract_strided_slice %17 {offsets = [0, 16], sizes = [8, 4], strides = [1, 1]} : vector<8x32xbf16> to vector<8x4xbf16>
    %128 = vector.extract_strided_slice %23 {offsets = [0, 16], sizes = [8, 4], strides = [1, 1]} : vector<8x32xbf16> to vector<8x4xbf16>
    %129 = vector.extract_strided_slice %29 {offsets = [0, 16], sizes = [8, 4], strides = [1, 1]} : vector<8x32xbf16> to vector<8x4xbf16>
    %cst_46 = arith.constant dense<0.000000e+00> : vector<8x8xf32>
    %130 = tpu.matmul %127, %128, %cst_46 {dimension_numbers = #tpu.dot_dimension_numbers<[1], [1], [0], [0], [0, 0, 1, 0], [], []>} : vector<8x4xbf16>, vector<8x4xbf16>, vector<8x8xf32> -> vector<8x8xf32>
    %cst_47 = arith.constant -1.000000e+04 : f32
    %131 = vector.broadcast %cst_47 : f32 to vector<8x8xf32>
    %132 = arith.select %33, %131, %130 : vector<8x8xi1>, vector<8x8xf32>
    %cst_48 = arith.constant dense<0xFF800000> : vector<8xf32>
    %133 = vector.multi_reduction <maximumf>, %132, %cst_48 [1] : vector<8x8xf32> to vector<8xf32>
    %134 = vector.shape_cast %133 : vector<8xf32> to vector<8x1xf32>
    %135 = vector.broadcast %134 : vector<8x1xf32> to vector<8x8xf32>
    %136 = arith.subf %132, %135 : vector<8x8xf32>
    %137 = math.exp %136 : vector<8x8xf32>
    %cst_49 = arith.constant dense<0.000000e+00> : vector<8xf32>
    %138 = vector.multi_reduction <add>, %137, %cst_49 [1] : vector<8x8xf32> to vector<8xf32>
    %139 = vector.shape_cast %138 : vector<8xf32> to vector<8x1xf32>
    %140 = tpu.reciprocal %139 {approx = true} : vector<8x1xf32> -> vector<8x1xf32>
    %141 = vector.broadcast %140 : vector<8x1xf32> to vector<8x8xf32>
    %142 = arith.mulf %137, %141 : vector<8x8xf32>
    %143 = arith.truncf %142 : vector<8x8xf32> to vector<8x8xbf16>
    %cst_50 = arith.constant dense<0.000000e+00> : vector<8x4xf32>
    %144 = tpu.matmul %143, %129, %cst_50 {dimension_numbers = #tpu.dot_dimension_numbers<[1], [0], [0], [1], [0, 0, 1, 1], [], []>} : vector<8x8xbf16>, vector<8x4xbf16>, vector<8x4xf32> -> vector<8x4xf32>
    %145 = arith.truncf %144 : vector<8x4xf32> to vector<8x4xbf16>
    %146 = vector.extract_strided_slice %35 {offsets = [16, 0], sizes = [4, 32], strides = [1, 1]} : vector<32x32xbf16> to vector<4x32xbf16>
    %cst_51 = arith.constant dense<0.000000e+00> : vector<8x32xf32>
    %147 = tpu.matmul %145, %146, %cst_51 {dimension_numbers = #tpu.dot_dimension_numbers<[1], [0], [0], [1], [0, 0, 1, 1], [], []>} : vector<8x4xbf16>, vector<4x32xbf16>, vector<8x32xf32> -> vector<8x32xf32>
    %148 = arith.addf %126, %147 : vector<8x32xf32>
    %149 = vector.extract_strided_slice %17 {offsets = [0, 20], sizes = [8, 4], strides = [1, 1]} : vector<8x32xbf16> to vector<8x4xbf16>
    %150 = vector.extract_strided_slice %23 {offsets = [0, 20], sizes = [8, 4], strides = [1, 1]} : vector<8x32xbf16> to vector<8x4xbf16>
    %151 = vector.extract_strided_slice %29 {offsets = [0, 20], sizes = [8, 4], strides = [1, 1]} : vector<8x32xbf16> to vector<8x4xbf16>
    %cst_52 = arith.constant dense<0.000000e+00> : vector<8x8xf32>
    %152 = tpu.matmul %149, %150, %cst_52 {dimension_numbers = #tpu.dot_dimension_numbers<[1], [1], [0], [0], [0, 0, 1, 0], [], []>} : vector<8x4xbf16>, vector<8x4xbf16>, vector<8x8xf32> -> vector<8x8xf32>
    %cst_53 = arith.constant -1.000000e+04 : f32
    %153 = vector.broadcast %cst_53 : f32 to vector<8x8xf32>
    %154 = arith.select %33, %153, %152 : vector<8x8xi1>, vector<8x8xf32>
    %cst_54 = arith.constant dense<0xFF800000> : vector<8xf32>
    %155 = vector.multi_reduction <maximumf>, %154, %cst_54 [1] : vector<8x8xf32> to vector<8xf32>
    %156 = vector.shape_cast %155 : vector<8xf32> to vector<8x1xf32>
    %157 = vector.broadcast %156 : vector<8x1xf32> to vector<8x8xf32>
    %158 = arith.subf %154, %157 : vector<8x8xf32>
    %159 = math.exp %158 : vector<8x8xf32>
    %cst_55 = arith.constant dense<0.000000e+00> : vector<8xf32>
    %160 = vector.multi_reduction <add>, %159, %cst_55 [1] : vector<8x8xf32> to vector<8xf32>
    %161 = vector.shape_cast %160 : vector<8xf32> to vector<8x1xf32>
    %162 = tpu.reciprocal %161 {approx = true} : vector<8x1xf32> -> vector<8x1xf32>
    %163 = vector.broadcast %162 : vector<8x1xf32> to vector<8x8xf32>
    %164 = arith.mulf %159, %163 : vector<8x8xf32>
    %165 = arith.truncf %164 : vector<8x8xf32> to vector<8x8xbf16>
    %cst_56 = arith.constant dense<0.000000e+00> : vector<8x4xf32>
    %166 = tpu.matmul %165, %151, %cst_56 {dimension_numbers = #tpu.dot_dimension_numbers<[1], [0], [0], [1], [0, 0, 1, 1], [], []>} : vector<8x8xbf16>, vector<8x4xbf16>, vector<8x4xf32> -> vector<8x4xf32>
    %167 = arith.truncf %166 : vector<8x4xf32> to vector<8x4xbf16>
    %168 = vector.extract_strided_slice %35 {offsets = [20, 0], sizes = [4, 32], strides = [1, 1]} : vector<32x32xbf16> to vector<4x32xbf16>
    %cst_57 = arith.constant dense<0.000000e+00> : vector<8x32xf32>
    %169 = tpu.matmul %167, %168, %cst_57 {dimension_numbers = #tpu.dot_dimension_numbers<[1], [0], [0], [1], [0, 0, 1, 1], [], []>} : vector<8x4xbf16>, vector<4x32xbf16>, vector<8x32xf32> -> vector<8x32xf32>
    %170 = arith.addf %148, %169 : vector<8x32xf32>
    %171 = vector.extract_strided_slice %17 {offsets = [0, 24], sizes = [8, 4], strides = [1, 1]} : vector<8x32xbf16> to vector<8x4xbf16>
    %172 = vector.extract_strided_slice %23 {offsets = [0, 24], sizes = [8, 4], strides = [1, 1]} : vector<8x32xbf16> to vector<8x4xbf16>
    %173 = vector.extract_strided_slice %29 {offsets = [0, 24], sizes = [8, 4], strides = [1, 1]} : vector<8x32xbf16> to vector<8x4xbf16>
    %cst_58 = arith.constant dense<0.000000e+00> : vector<8x8xf32>
    %174 = tpu.matmul %171, %172, %cst_58 {dimension_numbers = #tpu.dot_dimension_numbers<[1], [1], [0], [0], [0, 0, 1, 0], [], []>} : vector<8x4xbf16>, vector<8x4xbf16>, vector<8x8xf32> -> vector<8x8xf32>
    %cst_59 = arith.constant -1.000000e+04 : f32
    %175 = vector.broadcast %cst_59 : f32 to vector<8x8xf32>
    %176 = arith.select %33, %175, %174 : vector<8x8xi1>, vector<8x8xf32>
    %cst_60 = arith.constant dense<0xFF800000> : vector<8xf32>
    %177 = vector.multi_reduction <maximumf>, %176, %cst_60 [1] : vector<8x8xf32> to vector<8xf32>
    %178 = vector.shape_cast %177 : vector<8xf32> to vector<8x1xf32>
    %179 = vector.broadcast %178 : vector<8x1xf32> to vector<8x8xf32>
    %180 = arith.subf %176, %179 : vector<8x8xf32>
    %181 = math.exp %180 : vector<8x8xf32>
    %cst_61 = arith.constant dense<0.000000e+00> : vector<8xf32>
    %182 = vector.multi_reduction <add>, %181, %cst_61 [1] : vector<8x8xf32> to vector<8xf32>
    %183 = vector.shape_cast %182 : vector<8xf32> to vector<8x1xf32>
    %184 = tpu.reciprocal %183 {approx = true} : vector<8x1xf32> -> vector<8x1xf32>
    %185 = vector.broadcast %184 : vector<8x1xf32> to vector<8x8xf32>
    %186 = arith.mulf %181, %185 : vector<8x8xf32>
    %187 = arith.truncf %186 : vector<8x8xf32> to vector<8x8xbf16>
    %cst_62 = arith.constant dense<0.000000e+00> : vector<8x4xf32>
    %188 = tpu.matmul %187, %173, %cst_62 {dimension_numbers = #tpu.dot_dimension_numbers<[1], [0], [0], [1], [0, 0, 1, 1], [], []>} : vector<8x8xbf16>, vector<8x4xbf16>, vector<8x4xf32> -> vector<8x4xf32>
    %189 = arith.truncf %188 : vector<8x4xf32> to vector<8x4xbf16>
    %190 = vector.extract_strided_slice %35 {offsets = [24, 0], sizes = [4, 32], strides = [1, 1]} : vector<32x32xbf16> to vector<4x32xbf16>
    %cst_63 = arith.constant dense<0.000000e+00> : vector<8x32xf32>
    %191 = tpu.matmul %189, %190, %cst_63 {dimension_numbers = #tpu.dot_dimension_numbers<[1], [0], [0], [1], [0, 0, 1, 1], [], []>} : vector<8x4xbf16>, vector<4x32xbf16>, vector<8x32xf32> -> vector<8x32xf32>
    %192 = arith.addf %170, %191 : vector<8x32xf32>
    %193 = vector.extract_strided_slice %17 {offsets = [0, 28], sizes = [8, 4], strides = [1, 1]} : vector<8x32xbf16> to vector<8x4xbf16>
    %194 = vector.extract_strided_slice %23 {offsets = [0, 28], sizes = [8, 4], strides = [1, 1]} : vector<8x32xbf16> to vector<8x4xbf16>
    %195 = vector.extract_strided_slice %29 {offsets = [0, 28], sizes = [8, 4], strides = [1, 1]} : vector<8x32xbf16> to vector<8x4xbf16>
    %cst_64 = arith.constant dense<0.000000e+00> : vector<8x8xf32>
    %196 = tpu.matmul %193, %194, %cst_64 {dimension_numbers = #tpu.dot_dimension_numbers<[1], [1], [0], [0], [0, 0, 1, 0], [], []>} : vector<8x4xbf16>, vector<8x4xbf16>, vector<8x8xf32> -> vector<8x8xf32>
    %cst_65 = arith.constant -1.000000e+04 : f32
    %197 = vector.broadcast %cst_65 : f32 to vector<8x8xf32>
    %198 = arith.select %33, %197, %196 : vector<8x8xi1>, vector<8x8xf32>
    %cst_66 = arith.constant dense<0xFF800000> : vector<8xf32>
    %199 = vector.multi_reduction <maximumf>, %198, %cst_66 [1] : vector<8x8xf32> to vector<8xf32>
    %200 = vector.shape_cast %199 : vector<8xf32> to vector<8x1xf32>
    %201 = vector.broadcast %200 : vector<8x1xf32> to vector<8x8xf32>
    %202 = arith.subf %198, %201 : vector<8x8xf32>
    %203 = math.exp %202 : vector<8x8xf32>
    %cst_67 = arith.constant dense<0.000000e+00> : vector<8xf32>
    %204 = vector.multi_reduction <add>, %203, %cst_67 [1] : vector<8x8xf32> to vector<8xf32>
    %205 = vector.shape_cast %204 : vector<8xf32> to vector<8x1xf32>
    %206 = tpu.reciprocal %205 {approx = true} : vector<8x1xf32> -> vector<8x1xf32>
    %207 = vector.broadcast %206 : vector<8x1xf32> to vector<8x8xf32>
    %208 = arith.mulf %203, %207 : vector<8x8xf32>
    %209 = arith.truncf %208 : vector<8x8xf32> to vector<8x8xbf16>
    %cst_68 = arith.constant dense<0.000000e+00> : vector<8x4xf32>
    %210 = tpu.matmul %209, %195, %cst_68 {dimension_numbers = #tpu.dot_dimension_numbers<[1], [0], [0], [1], [0, 0, 1, 1], [], []>} : vector<8x8xbf16>, vector<8x4xbf16>, vector<8x4xf32> -> vector<8x4xf32>
    %211 = arith.truncf %210 : vector<8x4xf32> to vector<8x4xbf16>
    %212 = vector.extract_strided_slice %35 {offsets = [28, 0], sizes = [4, 32], strides = [1, 1]} : vector<32x32xbf16> to vector<4x32xbf16>
    %cst_69 = arith.constant dense<0.000000e+00> : vector<8x32xf32>
    %213 = tpu.matmul %211, %212, %cst_69 {dimension_numbers = #tpu.dot_dimension_numbers<[1], [0], [0], [1], [0, 0, 1, 1], [], []>} : vector<8x4xbf16>, vector<4x32xbf16>, vector<8x32xf32> -> vector<8x32xf32>
    %214 = arith.addf %192, %213 : vector<8x32xf32>
    %c0_70 = arith.constant 0 : index
    %c0_71 = arith.constant 0 : index
    %c0_72 = arith.constant 0 : index
    %215 = vector.load %arg9[%c0_70, %c0_71, %c0_72] : memref<1x8x32xf32, #tpu.memory_space<vmem>>, vector<1x8x32xf32>
    %216 = vector.shape_cast %215 : vector<1x8x32xf32> to vector<8x32xf32>
    %217 = vector.shape_cast %214 : vector<8x32xf32> to vector<1x8x32xf32>
    tpu.vector_store %arg9[%c0_70, %c0_71, %c0_72], %217 {strides = array<i32>} : memref<1x8x32xf32, #tpu.memory_space<vmem>>, vector<1x8x32xf32>,
    return
  }
  func.func @transform_0(%arg0: i32) -> (i32, i32, i32) {
    %c0_i32 = arith.constant 0 : i32
    %c0_i32_0 = arith.constant 0 : i32
    %c0_i32_1 = arith.constant 0 : i32
    return %arg0, %c0_i32, %c0_i32_0 : i32, i32, i32
  }
  func.func @transform_1(%arg0: i32) -> (i32, i32, i32) {
    %c0_i32 = arith.constant 0 : i32
    %c0_i32_0 = arith.constant 0 : i32
    %c0_i32_1 = arith.constant 0 : i32
    return %arg0, %c0_i32, %c0_i32_0 : i32, i32, i32
  }
  func.func @transform_2(%arg0: i32) -> (i32, i32, i32) {
    %c0_i32 = arith.constant 0 : i32
    %c0_i32_0 = arith.constant 0 : i32
    %c0_i32_1 = arith.constant 0 : i32
    return %arg0, %c0_i32, %c0_i32_0 : i32, i32, i32
  }
  func.func @transform_3(%arg0: i32) -> (i32, i32, i32, i32) {
    %c0_i32 = arith.constant 0 : i32
    %c0_i32_0 = arith.constant 0 : i32
    %c0_i32_1 = arith.constant 0 : i32
    %c0_i32_2 = arith.constant 0 : i32
    return %arg0, %c0_i32, %c0_i32_0, %c0_i32_1 : i32, i32, i32, i32
  }
  func.func @transform_4(%arg0: i32) -> (i32, i32) {
    %c0_i32 = arith.constant 0 : i32
    %c0_i32_0 = arith.constant 0 : i32
    %c0_i32_1 = arith.constant 0 : i32
    return %c0_i32, %c0_i32_0 : i32, i32
  }
  func.func @transform_5(%arg0: i32) -> (i32, i32) {
    %c0_i32 = arith.constant 0 : i32
    %c0_i32_0 = arith.constant 0 : i32
    %c0_i32_1 = arith.constant 0 : i32
    return %c0_i32, %c0_i32_0 : i32, i32
  }
  func.func @transform_6(%arg0: i32) -> (i32, i32) {
    %c0_i32 = arith.constant 0 : i32
    %c0_i32_0 = arith.constant 0 : i32
    %c0_i32_1 = arith.constant 0 : i32
    return %c0_i32, %c0_i32_0 : i32, i32
  }
  func.func @transform_7(%arg0: i32) -> (i32, i32) {
    %c0_i32 = arith.constant 0 : i32
    %c0_i32_0 = arith.constant 0 : i32
    %c0_i32_1 = arith.constant 0 : i32
    return %c0_i32, %c0_i32_0 : i32, i32
  }
  func.func @transform_8(%arg0: i32) -> (i32, i32, i32) {
    %c0_i32 = arith.constant 0 : i32
    %c0_i32_0 = arith.constant 0 : i32
    %c0_i32_1 = arith.constant 0 : i32
    return %arg0, %c0_i32, %c0_i32_0 : i32, i32, i32
  }
}

</mosaic_0001>

<llo_original>
// kernel: tpu_custom_call.1
$region0: #{tpu_custom_call.1}
  #allocation0 [shape = 'u32[]', space=smem, size = 0x4, offset = 0x4, fixed_abs, tag = 'smem constant byte address 0x4 - core index']
  #allocation1 [shape = 'u32[144,128]{1,0:T(1,128)}', space=vmem, size = 0x12000, scoped, tag = 'internal scratch']
  %s0 = inlined_call_operand.hbm [shape: f32[2,8,32], index: 0, kind: input, shape index: {}]
  %s1 = inlined_call_operand.hbm [shape: f32[2,8,32], index: 1, kind: input, shape index: {}]
  %s2 = inlined_call_operand.hbm [shape: f32[2,8,32], index: 2, kind: input, shape index: {}]
  %s3 = inlined_call_operand.hbm [shape: s32[2,1,8,8], index: 3, kind: input, shape index: {}]
  %s4 = inlined_call_operand.hbm [shape: f32[32,96], index: 4, kind: input, shape index: {}]
  %s5 = inlined_call_operand.vmem [shape: f32[1,96], index: 5, kind: input, shape index: {}]
  %s6 = inlined_call_operand.hbm [shape: f32[32,32], index: 6, kind: input, shape index: {}]
  %s7 = inlined_call_operand.vmem [shape: f32[1,32], index: 7, kind: input, shape index: {}]
  %s8 = inlined_call_operand.hbm [shape: f32[2,8,32], index: 8, kind: output, shape index: {}]
  %s9 = sld [smem:[#allocation0]]
  $region89: #{tpu_custom_call.1} parent=0
    _
  %s11 = ssub.s32 1, %s9
  %s12 = scalar_select 0, %s11, %s9
  $region1: #{tpu_custom_call.1} parent=0
    #allocation2 [shape = 'u8[8192]{0}', space=vmem, size = 0x2000, scoped, tag = 'input window, operand 0']
    #allocation3 [shape = 's32[2]{0}', space=sflag, size = 0x8, scoped, tag = 'scoped memory for tpu_custom_call.1']
    #allocation4 [shape = 's32[2]{0}', space=sflag, size = 0x8, scoped, tag = 'scoped memory for tpu_custom_call.1']
    #allocation5 [shape = 'u8[8192]{0}', space=vmem, size = 0x2000, scoped, tag = 'input window, operand 1']
    #allocation6 [shape = 's32[2]{0}', space=sflag, size = 0x8, scoped, tag = 'scoped memory for tpu_custom_call.1']
    #allocation7 [shape = 'u8[8192]{0}', space=vmem, size = 0x2000, scoped, tag = 'input window, operand 2']
    #allocation8 [shape = 'u8[8192]{0}', space=vmem, size = 0x2000, scoped, tag = 'input window, operand 3']
    #allocation9 [shape = 's32[2]{0}', space=sflag, size = 0x8, scoped, tag = 'scoped memory for tpu_custom_call.1']
    #allocation10 [shape = 'u8[16384]{0}', space=vmem, size = 0x4000, scoped, tag = 'input window, operand 4, single buffered']
    #allocation11 [shape = 'u8[16384]{0}', space=vmem, size = 0x4000, scoped, tag = 'input window, operand 6, single buffered']
    #allocation12 [shape = 's32[1]{0}', space=sflag, size = 0x4, scoped, tag = 'scoped memory for tpu_custom_call.1']
    #allocation13 [shape = 'u8[8192]{0}', space=vmem, size = 0x2000, scoped, tag = 'output window, operand 0']
    %13 = vsyncpa [#allocation3], 0
    %s14 = scalar_lea.sflag [#allocation3], 1
    %15 = vsyncpa %s14, 0
    %16 = vsyncpa [#allocation6], 0
    %s17 = scalar_lea.sflag [#allocation6], 1
    %18 = vsyncpa %s17, 0
    %19 = vsyncpa [#allocation9], 0
    %s20 = scalar_lea.sflag [#allocation9], 1
    %21 = vsyncpa %s20, 0
    %22 = vsyncpa [#allocation12], 0
    %23 = vsyncpa [#allocation4], 0
    %s24 = scalar_lea.sflag [#allocation4], 1
    %25 = vsyncpa %s24, 0
    loop: start=0, step=1, limit=4
    $region2: #{tpu_custom_call.1} parent=1 // loop_pre_header
      _
    $region3: #{tpu_custom_call.1} parent=1 // loop_header
      %s27 = sphi 0, %s31
      %p28 = scmp.ge.s32.totalorder %s27, 4
      %s37 = sphi 0, %s39
      %s40 = sphi 0, %s37
      %s41 = sphi 0, %s40
      %s57 = sphi 0, %s41
      %s63 = sphi 0, %s65
      %s66 = sphi 0, %s63
      %s67 = sphi 0, %s66
      %s83 = sphi 0, %s67
      %s89 = sphi 0, %s91
      %s92 = sphi 0, %s89
      %s93 = sphi 0, %s92
      %s109 = sphi 0, %s93
      %s115 = sphi 0, %s117
      %s118 = sphi 0, %s115
      %s119 = sphi 0, %s118
      %s135 = sphi 0, %s119
      %s139 = sphi 0, %s139
      %s141 = sphi 0, %s139
      %s142 = sphi 0, %s141
      %s156 = sphi 0, %s142
      %s160 = sphi 0, %s160
      %s162 = sphi 0, %s160
      %s163 = sphi 0, %s162
      %s177 = sphi 0, %s163
      %s181 = sphi 0, %s181
      %s183 = sphi 0, %s181
      %s184 = sphi 0, %s183
      %s198 = sphi 0, %s184
      %s202 = sphi 0, %s202
      %s204 = sphi 0, %s202
      %s205 = sphi 0, %s204
      %s219 = sphi 0, %s205
      %s225 = sphi 0, %s227
      %s228 = sphi 0, %s225
      %s229 = sphi 0, %s228
      %s245 = sphi 0, %s229
    $region4: #{tpu_custom_call.1} parent=1 // loop_header_branch
      %30 = sbr.rel (%p28) target = $region8
    $region5: #{tpu_custom_call.1} parent=1 // loop_body
      %s32 = ssub.s32 %s27, 1
      %s33 = ssub.s32 %s27, 2
      %s34 = sadd.s32 %s27, 1
      %s35 = ssub.s32 %s27, %s34
      %p36 = scmp.eq.s32.totalorder %s35, 0
      %s38 = sadd.s32 %s37, 1
      %s39 = scalar_select %p36, %s37, %s38
      %p42 = pneg %p36
      %p43 = scmp.eq.s32.totalorder %s27, 1
      %p44 = por %p42, %p43
      %p45 = scmp.ne.s32.totalorder %s37, %s40
      %p46 = scmp.eq.s32.totalorder %s27, 0
      %p47 = por %p45, %p46
      %p48 = scmp.ne.s32.totalorder %s37, %s40
      %p49 = scmp.eq.s32.totalorder %s32, 1
      %p50 = por %p48, %p49
      %p51 = scmp.ne.s32.totalorder %s40, %s41
      %p52 = scmp.eq.s32.totalorder %s32, 0
      %p53 = por %p51, %p52
      %p54 = scmp.ne.s32.totalorder %s40, %s41
      %p55 = scmp.eq.s32.totalorder %s33, 1
      %p56 = por %p54, %p55
      %p58 = scmp.ne.s32.totalorder %s41, %s57
      %p59 = scmp.eq.s32.totalorder %s33, 0
      %p60 = por %p58, %p59
      %s61 = ssub.s32 %s27, %s34
      %p62 = scmp.eq.s32.totalorder %s61, 0
      %s64 = sadd.s32 %s63, 1
      %s65 = scalar_select %p62, %s63, %s64
      %p68 = pneg %p62
      %p69 = scmp.eq.s32.totalorder %s27, 1
      %p70 = por %p68, %p69
      %p71 = scmp.ne.s32.totalorder %s63, %s66
      %p72 = scmp.eq.s32.totalorder %s27, 0
      %p73 = por %p71, %p72
      %p74 = scmp.ne.s32.totalorder %s63, %s66
      %p75 = scmp.eq.s32.totalorder %s32, 1
      %p76 = por %p74, %p75
      %p77 = scmp.ne.s32.totalorder %s66, %s67
      %p78 = scmp.eq.s32.totalorder %s32, 0
      %p79 = por %p77, %p78
      %p80 = scmp.ne.s32.totalorder %s66, %s67
      %p81 = scmp.eq.s32.totalorder %s33, 1
      %p82 = por %p80, %p81
      %p84 = scmp.ne.s32.totalorder %s67, %s83
      %p85 = scmp.eq.s32.totalorder %s33, 0
      %p86 = por %p84, %p85
      %s87 = ssub.s32 %s27, %s34
      %p88 = scmp.eq.s32.totalorder %s87, 0
      %s90 = sadd.s32 %s89, 1
      %s91 = scalar_select %p88, %s89, %s90
      %p94 = pneg %p88
      %p95 = scmp.eq.s32.totalorder %s27, 1
      %p96 = por %p94, %p95
      %p97 = scmp.ne.s32.totalorder %s89, %s92
      %p98 = scmp.eq.s32.totalorder %s27, 0
      %p99 = por %p97, %p98
      %p100 = scmp.ne.s32.totalorder %s89, %s92
      %p101 = scmp.eq.s32.totalorder %s32, 1
      %p102 = por %p100, %p101
      %p103 = scmp.ne.s32.totalorder %s92, %s93
      %p104 = scmp.eq.s32.totalorder %s32, 0
      %p105 = por %p103, %p104
      %p106 = scmp.ne.s32.totalorder %s92, %s93
      %p107 = scmp.eq.s32.totalorder %s33, 1
      %p108 = por %p106, %p107
      %p110 = scmp.ne.s32.totalorder %s93, %s109
      %p111 = scmp.eq.s32.totalorder %s33, 0
      %p112 = por %p110, %p111
      %s113 = ssub.s32 %s27, %s34
      %p114 = scmp.eq.s32.totalorder %s113, 0
      %s116 = sadd.s32 %s115, 1
      %s117 = scalar_select %p114, %s115, %s116
      %p120 = pneg %p114
      %p121 = scmp.eq.s32.totalorder %s27, 1
      %p122 = por %p120, %p121
      %p123 = scmp.ne.s32.totalorder %s115, %s118
      %p124 = scmp.eq.s32.totalorder %s27, 0
      %p125 = por %p123, %p124
      %p126 = scmp.ne.s32.totalorder %s115, %s118
      %p127 = scmp.eq.s32.totalorder %s32, 1
      %p128 = por %p126, %p127
      %p129 = scmp.ne.s32.totalorder %s118, %s119
      %p130 = scmp.eq.s32.totalorder %s32, 0
      %p131 = por %p129, %p130
      %p132 = scmp.ne.s32.totalorder %s118, %s119
      %p133 = scmp.eq.s32.totalorder %s33, 1
      %p134 = por %p132, %p133
      %p136 = scmp.ne.s32.totalorder %s119, %s135
      %p137 = scmp.eq.s32.totalorder %s33, 0
      %p138 = por %p136, %p137
      %s140 = sadd.s32 %s139, 1
      %p143 = scmp.eq.s32.totalorder %s27, 1
      %p144 = scmp.ne.s32.totalorder %s139, %s141
      %p145 = scmp.eq.s32.totalorder %s27, 0
      %p146 = por %p144, %p145
      %p147 = scmp.ne.s32.totalorder %s139, %s141
      %p148 = scmp.eq.s32.totalorder %s32, 1
      %p149 = por %p147, %p148
      %p150 = scmp.ne.s32.totalorder %s141, %s142
      %p151 = scmp.eq.s32.totalorder %s32, 0
      %p152 = por %p150, %p151
      %p153 = scmp.ne.s32.totalorder %s141, %s142
      %p154 = scmp.eq.s32.totalorder %s33, 1
      %p155 = por %p153, %p154
      %p157 = scmp.ne.s32.totalorder %s142, %s156
      %p158 = scmp.eq.s32.totalorder %s33, 0
      %p159 = por %p157, %p158
      %s161 = sadd.s32 %s160, 1
      %p164 = scmp.eq.s32.totalorder %s27, 1
      %p165 = scmp.ne.s32.totalorder %s160, %s162
      %p166 = scmp.eq.s32.totalorder %s27, 0
      %p167 = por %p165, %p166
      %p168 = scmp.ne.s32.totalorder %s160, %s162
      %p169 = scmp.eq.s32.totalorder %s32, 1
      %p170 = por %p168, %p169
      %p171 = scmp.ne.s32.totalorder %s162, %s163
      %p172 = scmp.eq.s32.totalorder %s32, 0
      %p173 = por %p171, %p172
      %p174 = scmp.ne.s32.totalorder %s162, %s163
      %p175 = scmp.eq.s32.totalorder %s33, 1
      %p176 = por %p174, %p175
      %p178 = scmp.ne.s32.totalorder %s163, %s177
      %p179 = scmp.eq.s32.totalorder %s33, 0
      %p180 = por %p178, %p179
      %s182 = sadd.s32 %s181, 1
      %p185 = scmp.eq.s32.totalorder %s27, 1
      %p186 = scmp.ne.s32.totalorder %s181, %s183
      %p187 = scmp.eq.s32.totalorder %s27, 0
      %p188 = por %p186, %p187
      %p189 = scmp.ne.s32.totalorder %s181, %s183
      %p190 = scmp.eq.s32.totalorder %s32, 1
      %p191 = por %p189, %p190
      %p192 = scmp.ne.s32.totalorder %s183, %s184
      %p193 = scmp.eq.s32.totalorder %s32, 0
      %p194 = por %p192, %p193
      %p195 = scmp.ne.s32.totalorder %s183, %s184
      %p196 = scmp.eq.s32.totalorder %s33, 1
      %p197 = por %p195, %p196
      %p199 = scmp.ne.s32.totalorder %s184, %s198
      %p200 = scmp.eq.s32.totalorder %s33, 0
      %p201 = por %p199, %p200
      %s203 = sadd.s32 %s202, 1
      %p206 = scmp.eq.s32.totalorder %s27, 1
      %p207 = scmp.ne.s32.totalorder %s202, %s204
      %p208 = scmp.eq.s32.totalorder %s27, 0
      %p209 = por %p207, %p208
      %p210 = scmp.ne.s32.totalorder %s202, %s204
      %p211 = scmp.eq.s32.totalorder %s32, 1
      %p212 = por %p210, %p211
      %p213 = scmp.ne.s32.totalorder %s204, %s205
      %p214 = scmp.eq.s32.totalorder %s32, 0
      %p215 = por %p213, %p214
      %p216 = scmp.ne.s32.totalorder %s204, %s205
      %p217 = scmp.eq.s32.totalorder %s33, 1
      %p218 = por %p216, %p217
      %p220 = scmp.ne.s32.totalorder %s205, %s219
      %p221 = scmp.eq.s32.totalorder %s33, 0
      %p222 = por %p220, %p221
      %s223 = ssub.s32 %s27, %s34
      %p224 = scmp.eq.s32.totalorder %s223, 0
      %s226 = sadd.s32 %s225, 1
      %s227 = scalar_select %p224, %s225, %s226
      %p230 = pneg %p224
      %p231 = scmp.eq.s32.totalorder %s27, 1
      %p232 = por %p230, %p231
      %p233 = scmp.ne.s32.totalorder %s225, %s228
      %p234 = scmp.eq.s32.totalorder %s27, 0
      %p235 = por %p233, %p234
      %p236 = scmp.ne.s32.totalorder %s225, %s228
      %p237 = scmp.eq.s32.totalorder %s32, 1
      %p238 = por %p236, %p237
      %p239 = scmp.ne.s32.totalorder %s228, %s229
      %p240 = scmp.eq.s32.totalorder %s32, 0
      %p241 = por %p239, %p240
      %p242 = scmp.ne.s32.totalorder %s228, %s229
      %p243 = scmp.eq.s32.totalorder %s33, 1
      %p244 = por %p242, %p243
      %p246 = scmp.ne.s32.totalorder %s229, %s245
      %p247 = scmp.eq.s32.totalorder %s33, 0
      %p248 = por %p246, %p247
      %p249 = scmp.le.s32.totalorder 1, %s27
      %p250 = scmp.lt.s32.totalorder %s27, 3
      %p251 = pnand %p249, %p250
      %p252 = pneg %p251
      // Predicated region
      $region9: #{tpu_custom_call.1} parent=5 // pred_check
        _
      $region10: #{tpu_custom_call.1} parent=5 // pred_check_branch
        %254 = sbr.rel (%p251) target = $region12
      $region11: #{tpu_custom_call.1} parent=5 // pred_region
        %s255 = ssub.s32 %s27, 1
        // Predicated region
        $region13: #{tpu_custom_call.1} parent=11 // pred_check
          %p256 = pneg %p152
        $region14: #{tpu_custom_call.1} parent=11 // pred_check_branch
          %258 = sbr.rel (%p256) target = $region16
        $region15: #{tpu_custom_call.1} parent=11 // pred_region
          %s260 = ssub.s32 512, 512
          %261 = vsyncadd [#allocation9], %s260
          %s262 = sshll.u32 [#allocation10], 4
          %s263 = int_to_ptr.vmem [resolvable:$true] %s262
          %268 = dma.hbm_to_vmem [thread:$0]  %s4, 512, %s263, [#allocation9], 128, 128, 8
        $region16: #{tpu_custom_call.1} parent=11 // pred_fallthru
          _
        // Predicated region
        $region17: #{tpu_custom_call.1} parent=11 // pred_check
          %p269 = pneg %p173
        $region18: #{tpu_custom_call.1} parent=11 // pred_check_branch
          %271 = sbr.rel (%p269) target = $region20
        $region19: #{tpu_custom_call.1} parent=11 // pred_region
          _
        $region20: #{tpu_custom_call.1} parent=11 // pred_fallthru
          _
        // Predicated region
        $region21: #{tpu_custom_call.1} parent=11 // pred_check
          %p272 = pneg %p194
        $region22: #{tpu_custom_call.1} parent=11 // pred_check_branch
          %274 = sbr.rel (%p272) target = $region24
        $region23: #{tpu_custom_call.1} parent=11 // pred_region
          %s276 = ssub.s32 512, 512
          %277 = vsyncadd [#allocation12], %s276
          %s278 = sshll.u32 [#allocation11], 4
          %s279 = int_to_ptr.vmem [resolvable:$true] %s278
          %284 = dma.hbm_to_vmem [thread:$0]  %s6, 512, %s279, [#allocation12], 128, 128, 8
        $region24: #{tpu_custom_call.1} parent=11 // pred_fallthru
          _
        // Predicated region
        $region25: #{tpu_custom_call.1} parent=11 // pred_check
          %p285 = pneg %p215
        $region26: #{tpu_custom_call.1} parent=11 // pred_check_branch
          %287 = sbr.rel (%p285) target = $region28
        $region27: #{tpu_custom_call.1} parent=11 // pred_region
          _
        $region28: #{tpu_custom_call.1} parent=11 // pred_fallthru
          _
      $region12: #{tpu_custom_call.1} parent=5 // pred_fallthru
        _
      %p288 = scmp.lt.s32.totalorder %s27, 2
      // Predicated region
      $region29: #{tpu_custom_call.1} parent=5 // pred_check
        %p289 = pneg %p288
      $region30: #{tpu_custom_call.1} parent=5 // pred_check_branch
        %291 = sbr.rel (%p289) target = $region32
      $region31: #{tpu_custom_call.1} parent=5 // pred_region
        // Predicated region
        $region33: #{tpu_custom_call.1} parent=31 // pred_check
          %p292 = pneg %p47
        $region34: #{tpu_custom_call.1} parent=31 // pred_check_branch
          %294 = sbr.rel (%p292) target = $region36
        $region35: #{tpu_custom_call.1} parent=31 // pred_region
          %s295 = sand.u32 %s37, 1
          %s296 = scalar_lea.sflag [#allocation3], %s295
          %s297 = sand.u32 %s37, 1
          %s298 = smul.addr %s297, 8
          %s299 = scalar_lea.vmem [#allocation2], %s298
          %s301 = ssub.s32 128, 128
          %302 = vsyncadd %s296, %s301
          %s303 = smul.addr %s27, 128
          %s304 = scalar_lea.hbm %s0, %s303
          %s306 = sshll.u32 %s299, 4
          %s307 = int_to_ptr.vmem [resolvable:$true] %s306
          %309 = dma.hbm_to_vmem [thread:$0]  %s304, 128, %s307, %s296
        $region36: #{tpu_custom_call.1} parent=31 // pred_fallthru
          _
        // Predicated region
        $region37: #{tpu_custom_call.1} parent=31 // pred_check
          %p310 = pneg %p73
        $region38: #{tpu_custom_call.1} parent=31 // pred_check_branch
          %312 = sbr.rel (%p310) target = $region40
        $region39: #{tpu_custom_call.1} parent=31 // pred_region
          %s313 = sand.u32 %s27, 1
          %s314 = scalar_lea.sflag [#allocation6], %s313
          %s315 = sand.u32 %s63, 1
          %s316 = smul.addr %s315, 8
          %s317 = scalar_lea.vmem [#allocation5], %s316
          %s319 = ssub.s32 128, 128
          %320 = vsyncadd %s314, %s319
          %s321 = smul.addr %s27, 128
          %s322 = scalar_lea.hbm %s1, %s321
          %s324 = sshll.u32 %s317, 4
          %s325 = int_to_ptr.vmem [resolvable:$true] %s324
          %327 = dma.hbm_to_vmem [thread:$0]  %s322, 128, %s325, %s314
        $region40: #{tpu_custom_call.1} parent=31 // pred_fallthru
          _
        // Predicated region
        $region41: #{tpu_custom_call.1} parent=31 // pred_check
          %p328 = pneg %p99
        $region42: #{tpu_custom_call.1} parent=31 // pred_check_branch
          %330 = sbr.rel (%p328) target = $region44
        $region43: #{tpu_custom_call.1} parent=31 // pred_region
          %s331 = sand.u32 %s27, 1
          %s332 = scalar_lea.sflag [#allocation6], %s331
          %s333 = sand.u32 %s89, 1
          %s334 = smul.addr %s333, 8
          %s335 = scalar_lea.vmem [#allocation7], %s334
          %s337 = ssub.s32 128, 128
          %338 = vsyncadd %s332, %s337
          %s339 = smul.addr %s27, 128
          %s340 = scalar_lea.hbm %s2, %s339
          %s342 = sshll.u32 %s335, 4
          %s343 = int_to_ptr.vmem [resolvable:$true] %s342
          %345 = dma.hbm_to_vmem [thread:$0]  %s340, 128, %s343, %s332
        $region44: #{tpu_custom_call.1} parent=31 // pred_fallthru
          _
        // Predicated region
        $region45: #{tpu_custom_call.1} parent=31 // pred_check
          %p346 = pneg %p125
        $region46: #{tpu_custom_call.1} parent=31 // pred_check_branch
          %348 = sbr.rel (%p346) target = $region48
        $region47: #{tpu_custom_call.1} parent=31 // pred_region
          %s349 = sand.u32 %s27, 1
          %s350 = scalar_lea.sflag [#allocation9], %s349
          %s351 = sand.u32 %s115, 1
          %s352 = smul.addr %s351, 8
          %s353 = scalar_lea.vmem [#allocation8], %s352
          %s355 = ssub.s32 128, 128
          %356 = vsyncadd %s350, %s355
          %s357 = smul.addr %s27, 128
          %s358 = scalar_lea.hbm %s3, %s357
          %s360 = sshll.u32 %s353, 4
          %s361 = int_to_ptr.vmem [resolvable:$true] %s360
          %363 = dma.hbm_to_vmem [thread:$0]  %s358, 128, %s361, %s350
        $region48: #{tpu_custom_call.1} parent=31 // pred_fallthru
          _
      $region32: #{tpu_custom_call.1} parent=5 // pred_fallthru
        _
      %p364 = scmp.le.s32.totalorder 1, %s27
      %p365 = scmp.lt.s32.totalorder %s27, 3
      %p366 = pnand %p364, %p365
      %p367 = pneg %p366
      // Predicated region
      $region49: #{tpu_custom_call.1} parent=5 // pred_check
        _
      $region50: #{tpu_custom_call.1} parent=5 // pred_check_branch
        %369 = sbr.rel (%p366) target = $region52
      $region51: #{tpu_custom_call.1} parent=5 // pred_region
        %s370 = ssub.s32 %s27, 1
        %s371 = sand.u32 %s40, 1
        %s372 = scalar_lea.sflag [#allocation3], %s371
        %s373 = sand.u32 %s40, 1
        %s374 = smul.addr %s373, 8
        %s375 = scalar_lea.vmem [#allocation2], %s374
        // Predicated region
        $region53: #{tpu_custom_call.1} parent=51 // pred_check
          %p376 = pneg %p53
        $region54: #{tpu_custom_call.1} parent=51 // pred_check_branch
          %378 = sbr.rel (%p376) target = $region56
        $region55: #{tpu_custom_call.1} parent=51 // pred_region
          %379 = dma.done %s372, 128
        $region56: #{tpu_custom_call.1} parent=51 // pred_fallthru
          _
        %s380 = sand.u32 %s32, 1
        %s381 = scalar_lea.sflag [#allocation6], %s380
        %s382 = sand.u32 %s66, 1
        %s383 = smul.addr %s382, 8
        %s384 = scalar_lea.vmem [#allocation5], %s383
        // Predicated region
        $region57: #{tpu_custom_call.1} parent=51 // pred_check
          %p385 = pneg %p79
        $region58: #{tpu_custom_call.1} parent=51 // pred_check_branch
          %387 = sbr.rel (%p385) target = $region60
        $region59: #{tpu_custom_call.1} parent=51 // pred_region
          %388 = dma.done %s381, 128
        $region60: #{tpu_custom_call.1} parent=51 // pred_fallthru
          _
        %s389 = sand.u32 %s32, 1
        %s390 = scalar_lea.sflag [#allocation6], %s389
        %s391 = sand.u32 %s92, 1
        %s392 = smul.addr %s391, 8
        %s393 = scalar_lea.vmem [#allocation7], %s392
        // Predicated region
        $region61: #{tpu_custom_call.1} parent=51 // pred_check
          %p394 = pneg %p105
        $region62: #{tpu_custom_call.1} parent=51 // pred_check_branch
          %396 = sbr.rel (%p394) target = $region64
        $region63: #{tpu_custom_call.1} parent=51 // pred_region
          %397 = dma.done %s390, 128
        $region64: #{tpu_custom_call.1} parent=51 // pred_fallthru
          _
        %s398 = sand.u32 %s32, 1
        %s399 = scalar_lea.sflag [#allocation9], %s398
        %s400 = sand.u32 %s118, 1
        %s401 = smul.addr %s400, 8
        %s402 = scalar_lea.vmem [#allocation8], %s401
        // Predicated region
        $region65: #{tpu_custom_call.1} parent=51 // pred_check
          %p403 = pneg %p131
        $region66: #{tpu_custom_call.1} parent=51 // pred_check_branch
          %405 = sbr.rel (%p403) target = $region68
        $region67: #{tpu_custom_call.1} parent=51 // pred_region
          %406 = dma.done %s399, 128
        $region68: #{tpu_custom_call.1} parent=51 // pred_fallthru
          _
        // Predicated region
        $region69: #{tpu_custom_call.1} parent=51 // pred_check
          %p407 = pneg %p152
        $region70: #{tpu_custom_call.1} parent=51 // pred_check_branch
          %409 = sbr.rel (%p407) target = $region72
        $region71: #{tpu_custom_call.1} parent=51 // pred_region
          %410 = dma.done [#allocation9], 512
        $region72: #{tpu_custom_call.1} parent=51 // pred_fallthru
          _
        // Predicated region
        $region73: #{tpu_custom_call.1} parent=51 // pred_check
          %p411 = pneg %p194
        $region74: #{tpu_custom_call.1} parent=51 // pred_check_branch
          %413 = sbr.rel (%p411) target = $region76
        $region75: #{tpu_custom_call.1} parent=51 // pred_region
          %414 = dma.done [#allocation12], 512
        $region76: #{tpu_custom_call.1} parent=51 // pred_fallthru
          _
        %s415 = sand.u32 %s40, 1
        %s416 = scalar_lea.sflag [#allocation3], %s415
        %s417 = sand.u32 %s40, 1
        %s418 = smul.addr %s417, 8
        %s419 = scalar_lea.vmem [#allocation2], %s418
        %p420 = pneg %p53
        %p421 = pneg %p50
        %s422 = sand.u32 %s32, 1
        %s423 = scalar_lea.sflag [#allocation6], %s422
        %s424 = sand.u32 %s66, 1
        %s425 = smul.addr %s424, 8
        %s426 = scalar_lea.vmem [#allocation5], %s425
        %p427 = pneg %p79
        %p428 = pneg %p76
        %s429 = sand.u32 %s32, 1
        %s430 = scalar_lea.sflag [#allocation6], %s429
        %s431 = sand.u32 %s92, 1
        %s432 = smul.addr %s431, 8
        %s433 = scalar_lea.vmem [#allocation7], %s432
        %p434 = pneg %p105
        %p435 = pneg %p102
        %s436 = sand.u32 %s32, 1
        %s437 = scalar_lea.sflag [#allocation9], %s436
        %s438 = sand.u32 %s118, 1
        %s439 = smul.addr %s438, 8
        %s440 = scalar_lea.vmem [#allocation8], %s439
        %p441 = pneg %p131
        %p442 = pneg %p128
        %p443 = pneg %p152
        %p444 = pneg %p149
        %p445 = pneg %p173
        %p446 = pneg %p170
        %p447 = pneg %p194
        %p448 = pneg %p191
        %p449 = pneg %p215
        %p450 = pneg %p212
        %p451 = pneg %p241
        %p452 = pneg %p238
        %s453 = sand.u32 %s228, 1
        %s454 = scalar_lea.sflag [#allocation4], %s453
        %s455 = sand.u32 %s228, 1
        %s456 = smul.addr %s455, 8
        %s457 = scalar_lea.vmem [#allocation13], %s456
        %v459 = vld [vmem:[%s375] sm:$0xff]
        %v460 = vpack.c.bf16 %v459, %v459
        %v461 = vld [vmem:[%s384] sm:$0xff]
        %v462 = vpack.c.bf16 %v461, %v461
        %v463 = vld [vmem:[%s393] sm:$0xff]
        %v464 = vpack.c.bf16 %v463, %v463
        %v465 = vld [vmem:[#allocation10] sm:$0xff]
        %v466 = vld [vmem:[#allocation10 + $0x8] sm:$0xff]
        %v467 = vld [vmem:[#allocation10 + $0x10] sm:$0xff]
        %v468 = vld [vmem:[#allocation10 + $0x18] sm:$0xff]
        %v469 = vpack.c.bf16 %v466, %v465
        %v470 = vpack.c.bf16 %v468, %v467
        %v471 = vld [vmem:[%s5] sm:$0x1]
        %v473 = vlaneseq
        %v474 = vshrl.u32 %v473, 7
        %v475 = vsub.s32 0, %v474
        %v476 = vrot.slane %v471, %v475
        %vm478 = vcmask 261120
        %v480 = vsel %vm478, %v460, 0
        %482 = vmatprep.subr.bf16.mxu0 0
        %483 = vmatpush1.bf16.msra.mxu0 %v469
        %484 = vmatprep.subr.bf16.mxu0 0
        %485 = vmatpush1.bf16.msra.mxu0 %v470
        %486 = vmatprep.subr.bf16.mxu0 0
        %487 = vmatpush1.bf16.msra.mxu0 0
        %488 = vmatprep.subr.bf16.mxu0 0
        %489 = vmatpush1.bf16.msra.mxu0 0
        %490 = vmatprep.subr.bf16.mxu0 0
        %491 = vmatpush1.bf16.msra.mxu0 0
        %492 = vmatprep.subr.bf16.mxu0 0
        %493 = vmatpush1.bf16.msra.mxu0 0
        %494 = vmatprep.subr.bf16.mxu0 0
        %495 = vmatpush1.bf16.msra.mxu0 0
        %496 = vmatprep.subr.bf16.mxu0 0
        %497 = vmatpush1.bf16.msra.mxu0 0
        %498 = vmatprep.subr.bf16.mxu0 0
        %499 = vmatpush1.bf16.msra.mxu0 0
        %500 = vmatprep.subr.bf16.mxu0 0
        %501 = vmatpush1.bf16.msra.mxu0 0
        %502 = vmatprep.subr.bf16.mxu0 0
        %503 = vmatpush1.bf16.msra.mxu0 0
        %504 = vmatprep.subr.bf16.mxu0 0
        %505 = vmatpush1.bf16.msra.mxu0 0
        %506 = vmatprep.subr.bf16.mxu0 0
        %507 = vmatpush1.bf16.msra.mxu0 0
        %508 = vmatprep.subr.bf16.mxu0 0
        %509 = vmatpush1.bf16.msra.mxu0 0
        %510 = vmatprep.subr.bf16.mxu0 0
        %511 = vmatpush1.bf16.msra.mxu0 0
        %512 = vmatprep.subr.bf16.mxu0 0
        %513 = vmatpush1.bf16.msra.mxu0 0
        %514 = vmatprep.mubr.bf16.mxu0 0
        %515 = vmatmul.mubr.bf16.gmra.mrb[0].mxu0 %v480
        %v516 = vpop.f32.mrb[0].mxu0
        %v517 = vadd.f32 %v476, %v516
        %v518 = vpop.f32.mrb[0].mxu0
        %v519 = vpop.f32.mrb[0].mxu0
        %v520 = vpop.f32.mrb[0].mxu0
        %521 = vdwg.mxu0
        %v522 = vpack.c.bf16 %v517, %v517
        %525 = vrot.lane.b32.xlu0 %v469, 96
        %v526 = vpop.permute.xlu0 %525
        %527 = vrot.lane.b32.xlu0 %v470, 96
        %v528 = vpop.permute.xlu0 %527
        %531 = vrot.lane.b32.xlu0 %v476, 96
        %v532 = vpop.permute.xlu0 %531
        %v535 = vsel %vm478, %v462, 0
        %537 = vmatprep.subr.bf16.mxu0 0
        %538 = vmatpush1.bf16.msra.mxu0 %v526
        %539 = vmatprep.subr.bf16.mxu0 0
        %540 = vmatpush1.bf16.msra.mxu0 %v528
        %541 = vmatprep.subr.bf16.mxu0 0
        %542 = vmatpush1.bf16.msra.mxu0 0
        %543 = vmatprep.subr.bf16.mxu0 0
        %544 = vmatpush1.bf16.msra.mxu0 0
        %545 = vmatprep.subr.bf16.mxu0 0
        %546 = vmatpush1.bf16.msra.mxu0 0
        %547 = vmatprep.subr.bf16.mxu0 0
        %548 = vmatpush1.bf16.msra.mxu0 0
        %549 = vmatprep.subr.bf16.mxu0 0
        %550 = vmatpush1.bf16.msra.mxu0 0
        %551 = vmatprep.subr.bf16.mxu0 0
        %552 = vmatpush1.bf16.msra.mxu0 0
        %553 = vmatprep.subr.bf16.mxu0 0
        %554 = vmatpush1.bf16.msra.mxu0 0
        %555 = vmatprep.subr.bf16.mxu0 0
        %556 = vmatpush1.bf16.msra.mxu0 0
        %557 = vmatprep.subr.bf16.mxu0 0
        %558 = vmatpush1.bf16.msra.mxu0 0
        %559 = vmatprep.subr.bf16.mxu0 0
        %560 = vmatpush1.bf16.msra.mxu0 0
        %561 = vmatprep.subr.bf16.mxu0 0
        %562 = vmatpush1.bf16.msra.mxu0 0
        %563 = vmatprep.subr.bf16.mxu0 0
        %564 = vmatpush1.bf16.msra.mxu0 0
        %565 = vmatprep.subr.bf16.mxu0 0
        %566 = vmatpush1.bf16.msra.mxu0 0
        %567 = vmatprep.subr.bf16.mxu0 0
        %568 = vmatpush1.bf16.msra.mxu0 0
        %569 = vmatprep.mubr.bf16.mxu0 0
        %570 = vmatmul.mubr.bf16.gmra.mrb[0].mxu0 %v535
        %v571 = vpop.f32.mrb[0].mxu0
        %v572 = vadd.f32 %v532, %v571
        %v573 = vpop.f32.mrb[0].mxu0
        %v574 = vpop.f32.mrb[0].mxu0
        %v575 = vpop.f32.mrb[0].mxu0
        %576 = vdwg.mxu0
        %v577 = vpack.c.bf16 %v572, %v572
        %578 = vrot.lane.b32.xlu0 %v469, 64
        %v579 = vpop.permute.xlu0 %578
        %580 = vrot.lane.b32.xlu0 %v470, 64
        %v581 = vpop.permute.xlu0 %580
        %584 = vrot.lane.b32.xlu0 %v476, 64
        %v585 = vpop.permute.xlu0 %584
        %v588 = vsel %vm478, %v464, 0
        %590 = vmatprep.subr.bf16.mxu0 0
        %591 = vmatpush1.bf16.msra.mxu0 %v579
        %592 = vmatprep.subr.bf16.mxu0 0
        %593 = vmatpush1.bf16.msra.mxu0 %v581
        %594 = vmatprep.subr.bf16.mxu0 0
        %595 = vmatpush1.bf16.msra.mxu0 0
        %596 = vmatprep.subr.bf16.mxu0 0
        %597 = vmatpush1.bf16.msra.mxu0 0
        %598 = vmatprep.subr.bf16.mxu0 0
        %599 = vmatpush1.bf16.msra.mxu0 0
        %600 = vmatprep.subr.bf16.mxu0 0
        %601 = vmatpush1.bf16.msra.mxu0 0
        %602 = vmatprep.subr.bf16.mxu0 0
        %603 = vmatpush1.bf16.msra.mxu0 0
        %604 = vmatprep.subr.bf16.mxu0 0
        %605 = vmatpush1.bf16.msra.mxu0 0
        %606 = vmatprep.subr.bf16.mxu0 0
        %607 = vmatpush1.bf16.msra.mxu0 0
        %608 = vmatprep.subr.bf16.mxu0 0
        %609 = vmatpush1.bf16.msra.mxu0 0
        %610 = vmatprep.subr.bf16.mxu0 0
        %611 = vmatpush1.bf16.msra.mxu0 0
        %612 = vmatprep.subr.bf16.mxu0 0
        %613 = vmatpush1.bf16.msra.mxu0 0
        %614 = vmatprep.subr.bf16.mxu0 0
        %615 = vmatpush1.bf16.msra.mxu0 0
        %616 = vmatprep.subr.bf16.mxu0 0
        %617 = vmatpush1.bf16.msra.mxu0 0
        %618 = vmatprep.subr.bf16.mxu0 0
        %619 = vmatpush1.bf16.msra.mxu0 0
        %620 = vmatprep.subr.bf16.mxu0 0
        %621 = vmatpush1.bf16.msra.mxu0 0
        %622 = vmatprep.mubr.bf16.mxu0 0
        %623 = vmatmul.mubr.bf16.gmra.mrb[0].mxu0 %v588
        %v624 = vpop.f32.mrb[0].mxu0
        %v625 = vadd.f32 %v585, %v624
        %v626 = vpop.f32.mrb[0].mxu0
        %v627 = vpop.f32.mrb[0].mxu0
        %v628 = vpop.f32.mrb[0].mxu0
        %629 = vdwg.mxu0
        %v630 = vpack.c.bf16 %v625, %v625
        %v631 = vld [vmem:[%s402] sm:$0xff]
        %vm632 = vcmp.eq.s32.totalorder %v631, 0
        %v633 = vld [vmem:[#allocation11] sm:$0xff]
        %v634 = vld [vmem:[#allocation11 + $0x8] sm:$0xff]
        %v635 = vld [vmem:[#allocation11 + $0x10] sm:$0xff]
        %v636 = vld [vmem:[#allocation11 + $0x18] sm:$0xff]
        %v637 = vpack.c.bf16 %v634, %v633
        %v638 = vpack.c.bf16 %v636, %v635
        %v639 = vld [vmem:[%s7] sm:$0x1]
        %v641 = vlaneseq
        %v642 = vshrl.u32 %v641, 7
        %v643 = vsub.s32 0, %v642
        %v644 = vrot.slane %v639, %v643
        %vm646 = vcmask 31744
        %v648 = vsel %vm646, %v522, 0
        %v651 = vsel %vm646, %v577, 0
        %653 = vmatprep.subr.bf16.mxu0 0
        %654 = vmatpush1.bf16.xpose.msra.mxu0 %v651
        %655 = vmatprep.subr.bf16.mxu0 0
        %656 = vmatpush1.bf16.xpose.msra.mxu0 0
        %657 = vmatprep.subr.bf16.mxu0 0
        %658 = vmatpush1.bf16.xpose.msra.mxu0 0
        %659 = vmatprep.subr.bf16.mxu0 0
        %660 = vmatpush1.bf16.xpose.msra.mxu0 0
        %661 = vmatprep.subr.bf16.mxu0 0
        %662 = vmatpush1.bf16.xpose.msra.mxu0 0
        %663 = vmatprep.subr.bf16.mxu0 0
        %664 = vmatpush1.bf16.xpose.msra.mxu0 0
        %665 = vmatprep.subr.bf16.mxu0 0
        %666 = vmatpush1.bf16.xpose.msra.mxu0 0
        %667 = vmatprep.subr.bf16.mxu0 0
        %668 = vmatpush1.bf16.xpose.msra.mxu0 0
        %669 = vmatprep.subr.bf16.mxu0 0
        %670 = vmatpush1.bf16.xpose.msra.mxu0 0
        %671 = vmatprep.subr.bf16.mxu0 0
        %672 = vmatpush1.bf16.xpose.msra.mxu0 0
        %673 = vmatprep.subr.bf16.mxu0 0
        %674 = vmatpush1.bf16.xpose.msra.mxu0 0
        %675 = vmatprep.subr.bf16.mxu0 0
        %676 = vmatpush1.bf16.xpose.msra.mxu0 0
        %677 = vmatprep.subr.bf16.mxu0 0
        %678 = vmatpush1.bf16.xpose.msra.mxu0 0
        %679 = vmatprep.subr.bf16.mxu0 0
        %680 = vmatpush1.bf16.xpose.msra.mxu0 0
        %681 = vmatprep.subr.bf16.mxu0 0
        %682 = vmatpush1.bf16.xpose.msra.mxu0 0
        %683 = vmatprep.subr.bf16.mxu0 0
        %684 = vmatpush1.bf16.xpose.msra.mxu0 0
        %685 = vmatprep.mubr.bf16.mxu0 0
        %686 = vmatmul.mubr.bf16.gmra.mrb[0].mxu0 %v648
        %v687 = vpop.f32.mrb[0].mxu0
        %v688 = vadd.f32 0.0, %v687
        %v689 = vpop.f32.mrb[0].mxu0
        %v690 = vpop.f32.mrb[0].mxu0
        %v691 = vpop.f32.mrb[0].mxu0
        %692 = vdwg.mxu0
        %v693 = vsel %vm632, -10000.0, %v688
        %vm694 = vcmask 64512
        %v695 = vsel %vm694, %v693, -inf
        %696 = vmax.xlane.f32.xlu0 %v695
        %v697 = vpop.xlane.xlu0 %696
        %v698 = vsub.f32 %v693, %v697
        %v699 = vmul.f32 %v698, 1.442695
        %v700 = vpow.pop %v699
        %v701 = vsel %vm694, %v700, 0.0
        %702 = vadd.xlane.f32.xlu0 %v701
        %v703 = vpop.xlane.xlu0 %702
        %v704 = vrcp.pop %v703
        %v705 = vmul.f32 %v700, %v704
        %v706 = vpack.c.bf16 %v705, %v705
        %v708 = vsel %vm694, %v706, 0
        %vm710 = vcmask 1043456
        %v712 = vsel %vm710, %v630, 0
        %714 = vmatprep.subr.bf16.mxu0 0
        %715 = vmatpush1.bf16.msra.mxu0 %v712
        %716 = vmatprep.subr.bf16.mxu0 0
        %717 = vmatpush1.bf16.msra.mxu0 0
        %718 = vmatprep.subr.bf16.mxu0 0
        %719 = vmatpush1.bf16.msra.mxu0 0
        %720 = vmatprep.subr.bf16.mxu0 0
        %721 = vmatpush1.bf16.msra.mxu0 0
        %722 = vmatprep.subr.bf16.mxu0 0
        %723 = vmatpush1.bf16.msra.mxu0 0
        %724 = vmatprep.subr.bf16.mxu0 0
        %725 = vmatpush1.bf16.msra.mxu0 0
        %726 = vmatprep.subr.bf16.mxu0 0
        %727 = vmatpush1.bf16.msra.mxu0 0
        %728 = vmatprep.subr.bf16.mxu0 0
        %729 = vmatpush1.bf16.msra.mxu0 0
        %730 = vmatprep.subr.bf16.mxu0 0
        %731 = vmatpush1.bf16.msra.mxu0 0
        %732 = vmatprep.subr.bf16.mxu0 0
        %733 = vmatpush1.bf16.msra.mxu0 0
        %734 = vmatprep.subr.bf16.mxu0 0
        %735 = vmatpush1.bf16.msra.mxu0 0
        %736 = vmatprep.subr.bf16.mxu0 0
        %737 = vmatpush1.bf16.msra.mxu0 0
        %738 = vmatprep.subr.bf16.mxu0 0
        %739 = vmatpush1.bf16.msra.mxu0 0
        %740 = vmatprep.subr.bf16.mxu0 0
        %741 = vmatpush1.bf16.msra.mxu0 0
        %742 = vmatprep.subr.bf16.mxu0 0
        %743 = vmatpush1.bf16.msra.mxu0 0
        %744 = vmatprep.subr.bf16.mxu0 0
        %745 = vmatpush1.bf16.msra.mxu0 0
        %746 = vmatprep.mubr.bf16.mxu0 0
        %747 = vmatmul.mubr.bf16.gmra.mrb[0].mxu0 %v708
        %v748 = vpop.f32.mrb[0].mxu0
        %v749 = vadd.f32 0.0, %v748
        %v750 = vpop.f32.mrb[0].mxu0
        %v751 = vpop.f32.mrb[0].mxu0
        %v752 = vpop.f32.mrb[0].mxu0
        %753 = vdwg.mxu0
        %v754 = vpack.c.bf16 %v749, %v749
        %v756 = vsel %vm646, %v754, 0
        %vm758 = vcmask 1041408
        %v760 = vsel %vm758, %v637, 0
        %762 = vmatprep.subr.bf16.mxu0 0
        %763 = vmatpush1.bf16.msra.mxu0 %v760
        %764 = vmatprep.subr.bf16.mxu0 0
        %765 = vmatpush1.bf16.msra.mxu0 0
        %766 = vmatprep.subr.bf16.mxu0 0
        %767 = vmatpush1.bf16.msra.mxu0 0
        %768 = vmatprep.subr.bf16.mxu0 0
        %769 = vmatpush1.bf16.msra.mxu0 0
        %770 = vmatprep.subr.bf16.mxu0 0
        %771 = vmatpush1.bf16.msra.mxu0 0
        %772 = vmatprep.subr.bf16.mxu0 0
        %773 = vmatpush1.bf16.msra.mxu0 0
        %774 = vmatprep.subr.bf16.mxu0 0
        %775 = vmatpush1.bf16.msra.mxu0 0
        %776 = vmatprep.subr.bf16.mxu0 0
        %777 = vmatpush1.bf16.msra.mxu0 0
        %778 = vmatprep.subr.bf16.mxu0 0
        %779 = vmatpush1.bf16.msra.mxu0 0
        %780 = vmatprep.subr.bf16.mxu0 0
        %781 = vmatpush1.bf16.msra.mxu0 0
        %782 = vmatprep.subr.bf16.mxu0 0
        %783 = vmatpush1.bf16.msra.mxu0 0
        %784 = vmatprep.subr.bf16.mxu0 0
        %785 = vmatpush1.bf16.msra.mxu0 0
        %786 = vmatprep.subr.bf16.mxu0 0
        %787 = vmatpush1.bf16.msra.mxu0 0
        %788 = vmatprep.subr.bf16.mxu0 0
        %789 = vmatpush1.bf16.msra.mxu0 0
        %790 = vmatprep.subr.bf16.mxu0 0
        %791 = vmatpush1.bf16.msra.mxu0 0
        %792 = vmatprep.subr.bf16.mxu0 0
        %793 = vmatpush1.bf16.msra.mxu0 0
        %794 = vmatprep.mubr.bf16.mxu0 0
        %795 = vmatmul.mubr.bf16.gmra.mrb[0].mxu0 %v756
        %v796 = vpop.f32.mrb[0].mxu0
        %v797 = vadd.f32 0.0, %v796
        %v798 = vpop.f32.mrb[0].mxu0
        %v799 = vpop.f32.mrb[0].mxu0
        %v800 = vpop.f32.mrb[0].mxu0
        %801 = vdwg.mxu0
        %v802 = vadd.f32 %v644, %v797
        %804 = vrot.lane.b32.xlu0 %v522, 124
        %v805 = vpop.permute.xlu0 %804
        %807 = vrot.lane.b32.xlu0 %v577, 124
        %v808 = vpop.permute.xlu0 %807
        %v810 = vsel %vm646, %v805, 0
        %v813 = vsel %vm646, %v808, 0
        %815 = vmatprep.subr.bf16.mxu0 0
        %816 = vmatpush1.bf16.xpose.msra.mxu0 %v813
        %817 = vmatprep.subr.bf16.mxu0 0
        %818 = vmatpush1.bf16.xpose.msra.mxu0 0
        %819 = vmatprep.subr.bf16.mxu0 0
        %820 = vmatpush1.bf16.xpose.msra.mxu0 0
        %821 = vmatprep.subr.bf16.mxu0 0
        %822 = vmatpush1.bf16.xpose.msra.mxu0 0
        %823 = vmatprep.subr.bf16.mxu0 0
        %824 = vmatpush1.bf16.xpose.msra.mxu0 0
        %825 = vmatprep.subr.bf16.mxu0 0
        %826 = vmatpush1.bf16.xpose.msra.mxu0 0
        %827 = vmatprep.subr.bf16.mxu0 0
        %828 = vmatpush1.bf16.xpose.msra.mxu0 0
        %829 = vmatprep.subr.bf16.mxu0 0
        %830 = vmatpush1.bf16.xpose.msra.mxu0 0
        %831 = vmatprep.subr.bf16.mxu0 0
        %832 = vmatpush1.bf16.xpose.msra.mxu0 0
        %833 = vmatprep.subr.bf16.mxu0 0
        %834 = vmatpush1.bf16.xpose.msra.mxu0 0
        %835 = vmatprep.subr.bf16.mxu0 0
        %836 = vmatpush1.bf16.xpose.msra.mxu0 0
        %837 = vmatprep.subr.bf16.mxu0 0
        %838 = vmatpush1.bf16.xpose.msra.mxu0 0
        %839 = vmatprep.subr.bf16.mxu0 0
        %840 = vmatpush1.bf16.xpose.msra.mxu0 0
        %841 = vmatprep.subr.bf16.mxu0 0
        %842 = vmatpush1.bf16.xpose.msra.mxu0 0
        %843 = vmatprep.subr.bf16.mxu0 0
        %844 = vmatpush1.bf16.xpose.msra.mxu0 0
        %845 = vmatprep.subr.bf16.mxu0 0
        %846 = vmatpush1.bf16.xpose.msra.mxu0 0
        %847 = vmatprep.mubr.bf16.mxu0 0
        %848 = vmatmul.mubr.bf16.gmra.mrb[0].mxu0 %v810
        %v849 = vpop.f32.mrb[0].mxu0
        %v850 = vadd.f32 0.0, %v849
        %v851 = vpop.f32.mrb[0].mxu0
        %v852 = vpop.f32.mrb[0].mxu0
        %v853 = vpop.f32.mrb[0].mxu0
        %854 = vdwg.mxu0
        %v855 = vsel %vm632, -10000.0, %v850
        %v856 = vsel %vm694, %v855, -inf
        %857 = vmax.xlane.f32.xlu0 %v856
        %v858 = vpop.xlane.xlu0 %857
        %v859 = vsub.f32 %v855, %v858
        %v860 = vmul.f32 %v859, 1.442695
        %v861 = vpow.pop %v860
        %v862 = vsel %vm694, %v861, 0.0
        %863 = vadd.xlane.f32.xlu0 %v862
        %v864 = vpop.xlane.xlu0 %863
        %v865 = vrcp.pop %v864
        %v866 = vmul.f32 %v861, %v865
        %v867 = vpack.c.bf16 %v866, %v866
        %869 = vrot.lane.b32.xlu0 %v630, 124
        %v870 = vpop.permute.xlu0 %869
        %v872 = vsel %vm694, %v867, 0
        %v875 = vsel %vm710, %v870, 0
        %877 = vmatprep.subr.bf16.mxu0 0
        %878 = vmatpush1.bf16.msra.mxu0 %v875
        %879 = vmatprep.subr.bf16.mxu0 0
        %880 = vmatpush1.bf16.msra.mxu0 0
        %881 = vmatprep.subr.bf16.mxu0 0
        %882 = vmatpush1.bf16.msra.mxu0 0
        %883 = vmatprep.subr.bf16.mxu0 0
        %884 = vmatpush1.bf16.msra.mxu0 0
        %885 = vmatprep.subr.bf16.mxu0 0
        %886 = vmatpush1.bf16.msra.mxu0 0
        %887 = vmatprep.subr.bf16.mxu0 0
        %888 = vmatpush1.bf16.msra.mxu0 0
        %889 = vmatprep.subr.bf16.mxu0 0
        %890 = vmatpush1.bf16.msra.mxu0 0
        %891 = vmatprep.subr.bf16.mxu0 0
        %892 = vmatpush1.bf16.msra.mxu0 0
        %893 = vmatprep.subr.bf16.mxu0 0
        %894 = vmatpush1.bf16.msra.mxu0 0
        %895 = vmatprep.subr.bf16.mxu0 0
        %896 = vmatpush1.bf16.msra.mxu0 0
        %897 = vmatprep.subr.bf16.mxu0 0
        %898 = vmatpush1.bf16.msra.mxu0 0
        %899 = vmatprep.subr.bf16.mxu0 0
        %900 = vmatpush1.bf16.msra.mxu0 0
        %901 = vmatprep.subr.bf16.mxu0 0
        %902 = vmatpush1.bf16.msra.mxu0 0
        %903 = vmatprep.subr.bf16.mxu0 0
        %904 = vmatpush1.bf16.msra.mxu0 0
        %905 = vmatprep.subr.bf16.mxu0 0
        %906 = vmatpush1.bf16.msra.mxu0 0
        %907 = vmatprep.subr.bf16.mxu0 0
        %908 = vmatpush1.bf16.msra.mxu0 0
        %909 = vmatprep.mubr.bf16.mxu0 0
        %910 = vmatmul.mubr.bf16.gmra.mrb[0].mxu0 %v872
        %v911 = vpop.f32.mrb[0].mxu0
        %v912 = vadd.f32 0.0, %v911
        %v913 = vpop.f32.mrb[0].mxu0
        %v914 = vpop.f32.mrb[0].mxu0
        %v915 = vpop.f32.mrb[0].mxu0
        %916 = vdwg.mxu0
        %v917 = vpack.c.bf16 %v912, %v912
        %v919 = vrot.slane %v637, 2
        %v921 = vsel %vm646, %v917, 0
        %v924 = vsel %vm758, %v919, 0
        %926 = vmatprep.subr.bf16.mxu0 0
        %927 = vmatpush1.bf16.msra.mxu0 %v924
        %928 = vmatprep.subr.bf16.mxu0 0
        %929 = vmatpush1.bf16.msra.mxu0 0
        %930 = vmatprep.subr.bf16.mxu0 0
        %931 = vmatpush1.bf16.msra.mxu0 0
        %932 = vmatprep.subr.bf16.mxu0 0
        %933 = vmatpush1.bf16.msra.mxu0 0
        %934 = vmatprep.subr.bf16.mxu0 0
        %935 = vmatpush1.bf16.msra.mxu0 0
        %936 = vmatprep.subr.bf16.mxu0 0
        %937 = vmatpush1.bf16.msra.mxu0 0
        %938 = vmatprep.subr.bf16.mxu0 0
        %939 = vmatpush1.bf16.msra.mxu0 0
        %940 = vmatprep.subr.bf16.mxu0 0
        %941 = vmatpush1.bf16.msra.mxu0 0
        %942 = vmatprep.subr.bf16.mxu0 0
        %943 = vmatpush1.bf16.msra.mxu0 0
        %944 = vmatprep.subr.bf16.mxu0 0
        %945 = vmatpush1.bf16.msra.mxu0 0
        %946 = vmatprep.subr.bf16.mxu0 0
        %947 = vmatpush1.bf16.msra.mxu0 0
        %948 = vmatprep.subr.bf16.mxu0 0
        %949 = vmatpush1.bf16.msra.mxu0 0
        %950 = vmatprep.subr.bf16.mxu0 0
        %951 = vmatpush1.bf16.msra.mxu0 0
        %952 = vmatprep.subr.bf16.mxu0 0
        %953 = vmatpush1.bf16.msra.mxu0 0
        %954 = vmatprep.subr.bf16.mxu0 0
        %955 = vmatpush1.bf16.msra.mxu0 0
        %956 = vmatprep.subr.bf16.mxu0 0
        %957 = vmatpush1.bf16.msra.mxu0 0
        %958 = vmatprep.mubr.bf16.mxu0 0
        %959 = vmatmul.mubr.bf16.gmra.mrb[0].mxu0 %v921
        %v960 = vpop.f32.mrb[0].mxu0
        %v961 = vadd.f32 0.0, %v960
        %v962 = vpop.f32.mrb[0].mxu0
        %v963 = vpop.f32.mrb[0].mxu0
        %v964 = vpop.f32.mrb[0].mxu0
        %965 = vdwg.mxu0
        %v966 = vadd.f32 %v802, %v961
        %967 = vrot.lane.b32.xlu0 %v522, 120
        %v968 = vpop.permute.xlu0 %967
        %969 = vrot.lane.b32.xlu0 %v577, 120
        %v970 = vpop.permute.xlu0 %969
        %v972 = vsel %vm646, %v968, 0
        %v975 = vsel %vm646, %v970, 0
        %977 = vmatprep.subr.bf16.mxu0 0
        %978 = vmatpush1.bf16.xpose.msra.mxu0 %v975
        %979 = vmatprep.subr.bf16.mxu0 0
        %980 = vmatpush1.bf16.xpose.msra.mxu0 0
        %981 = vmatprep.subr.bf16.mxu0 0
        %982 = vmatpush1.bf16.xpose.msra.mxu0 0
        %983 = vmatprep.subr.bf16.mxu0 0
        %984 = vmatpush1.bf16.xpose.msra.mxu0 0
        %985 = vmatprep.subr.bf16.mxu0 0
        %986 = vmatpush1.bf16.xpose.msra.mxu0 0
        %987 = vmatprep.subr.bf16.mxu0 0
        %988 = vmatpush1.bf16.xpose.msra.mxu0 0
        %989 = vmatprep.subr.bf16.mxu0 0
        %990 = vmatpush1.bf16.xpose.msra.mxu0 0
        %991 = vmatprep.subr.bf16.mxu0 0
        %992 = vmatpush1.bf16.xpose.msra.mxu0 0
        %993 = vmatprep.subr.bf16.mxu0 0
        %994 = vmatpush1.bf16.xpose.msra.mxu0 0
        %995 = vmatprep.subr.bf16.mxu0 0
        %996 = vmatpush1.bf16.xpose.msra.mxu0 0
        %997 = vmatprep.subr.bf16.mxu0 0
        %998 = vmatpush1.bf16.xpose.msra.mxu0 0
        %999 = vmatprep.subr.bf16.mxu0 0
        %1000 = vmatpush1.bf16.xpose.msra.mxu0 0
        %1001 = vmatprep.subr.bf16.mxu0 0
        %1002 = vmatpush1.bf16.xpose.msra.mxu0 0
        %1003 = vmatprep.subr.bf16.mxu0 0
        %1004 = vmatpush1.bf16.xpose.msra.mxu0 0
        %1005 = vmatprep.subr.bf16.mxu0 0
        %1006 = vmatpush1.bf16.xpose.msra.mxu0 0
        %1007 = vmatprep.subr.bf16.mxu0 0
        %1008 = vmatpush1.bf16.xpose.msra.mxu0 0
        %1009 = vmatprep.mubr.bf16.mxu0 0
        %1010 = vmatmul.mubr.bf16.gmra.mrb[0].mxu0 %v972
        %v1011 = vpop.f32.mrb[0].mxu0
        %v1012 = vadd.f32 0.0, %v1011
        %v1013 = vpop.f32.mrb[0].mxu0
        %v1014 = vpop.f32.mrb[0].mxu0
        %v1015 = vpop.f32.mrb[0].mxu0
        %1016 = vdwg.mxu0
        %v1017 = vsel %vm632, -10000.0, %v1012
        %v1018 = vsel %vm694, %v1017, -inf
        %1019 = vmax.xlane.f32.xlu0 %v1018
        %v1020 = vpop.xlane.xlu0 %1019
        %v1021 = vsub.f32 %v1017, %v1020
        %v1022 = vmul.f32 %v1021, 1.442695
        %v1023 = vpow.pop %v1022
        %v1024 = vsel %vm694, %v1023, 0.0
        %1025 = vadd.xlane.f32.xlu0 %v1024
        %v1026 = vpop.xlane.xlu0 %1025
        %v1027 = vrcp.pop %v1026
        %v1028 = vmul.f32 %v1023, %v1027
        %v1029 = vpack.c.bf16 %v1028, %v1028
        %1030 = vrot.lane.b32.xlu0 %v630, 120
        %v1031 = vpop.permute.xlu0 %1030
        %v1033 = vsel %vm694, %v1029, 0
        %v1036 = vsel %vm710, %v1031, 0
        %1038 = vmatprep.subr.bf16.mxu0 0
        %1039 = vmatpush1.bf16.msra.mxu0 %v1036
        %1040 = vmatprep.subr.bf16.mxu0 0
        %1041 = vmatpush1.bf16.msra.mxu0 0
        %1042 = vmatprep.subr.bf16.mxu0 0
        %1043 = vmatpush1.bf16.msra.mxu0 0
        %1044 = vmatprep.subr.bf16.mxu0 0
        %1045 = vmatpush1.bf16.msra.mxu0 0
        %1046 = vmatprep.subr.bf16.mxu0 0
        %1047 = vmatpush1.bf16.msra.mxu0 0
        %1048 = vmatprep.subr.bf16.mxu0 0
        %1049 = vmatpush1.bf16.msra.mxu0 0
        %1050 = vmatprep.subr.bf16.mxu0 0
        %1051 = vmatpush1.bf16.msra.mxu0 0
        %1052 = vmatprep.subr.bf16.mxu0 0
        %1053 = vmatpush1.bf16.msra.mxu0 0
        %1054 = vmatprep.subr.bf16.mxu0 0
        %1055 = vmatpush1.bf16.msra.mxu0 0
        %1056 = vmatprep.subr.bf16.mxu0 0
        %1057 = vmatpush1.bf16.msra.mxu0 0
        %1058 = vmatprep.subr.bf16.mxu0 0
        %1059 = vmatpush1.bf16.msra.mxu0 0
        %1060 = vmatprep.subr.bf16.mxu0 0
        %1061 = vmatpush1.bf16.msra.mxu0 0
        %1062 = vmatprep.subr.bf16.mxu0 0
        %1063 = vmatpush1.bf16.msra.mxu0 0
        %1064 = vmatprep.subr.bf16.mxu0 0
        %1065 = vmatpush1.bf16.msra.mxu0 0
        %1066 = vmatprep.subr.bf16.mxu0 0
        %1067 = vmatpush1.bf16.msra.mxu0 0
        %1068 = vmatprep.subr.bf16.mxu0 0
        %1069 = vmatpush1.bf16.msra.mxu0 0
        %1070 = vmatprep.mubr.bf16.mxu0 0
        %1071 = vmatmul.mubr.bf16.gmra.mrb[0].mxu0 %v1033
        %v1072 = vpop.f32.mrb[0].mxu0
        %v1073 = vadd.f32 0.0, %v1072
        %v1074 = vpop.f32.mrb[0].mxu0
        %v1075 = vpop.f32.mrb[0].mxu0
        %v1076 = vpop.f32.mrb[0].mxu0
        %1077 = vdwg.mxu0
        %v1078 = vpack.c.bf16 %v1073, %v1073
        %v1079 = vrot.slane %v637, 4
        %v1081 = vsel %vm646, %v1078, 0
        %v1084 = vsel %vm758, %v1079, 0
        %1086 = vmatprep.subr.bf16.mxu0 0
        %1087 = vmatpush1.bf16.msra.mxu0 %v1084
        %1088 = vmatprep.subr.bf16.mxu0 0
        %1089 = vmatpush1.bf16.msra.mxu0 0
        %1090 = vmatprep.subr.bf16.mxu0 0
        %1091 = vmatpush1.bf16.msra.mxu0 0
        %1092 = vmatprep.subr.bf16.mxu0 0
        %1093 = vmatpush1.bf16.msra.mxu0 0
        %1094 = vmatprep.subr.bf16.mxu0 0
        %1095 = vmatpush1.bf16.msra.mxu0 0
        %1096 = vmatprep.subr.bf16.mxu0 0
        %1097 = vmatpush1.bf16.msra.mxu0 0
        %1098 = vmatprep.subr.bf16.mxu0 0
        %1099 = vmatpush1.bf16.msra.mxu0 0
        %1100 = vmatprep.subr.bf16.mxu0 0
        %1101 = vmatpush1.bf16.msra.mxu0 0
        %1102 = vmatprep.subr.bf16.mxu0 0
        %1103 = vmatpush1.bf16.msra.mxu0 0
        %1104 = vmatprep.subr.bf16.mxu0 0
        %1105 = vmatpush1.bf16.msra.mxu0 0
        %1106 = vmatprep.subr.bf16.mxu0 0
        %1107 = vmatpush1.bf16.msra.mxu0 0
        %1108 = vmatprep.subr.bf16.mxu0 0
        %1109 = vmatpush1.bf16.msra.mxu0 0
        %1110 = vmatprep.subr.bf16.mxu0 0
        %1111 = vmatpush1.bf16.msra.mxu0 0
        %1112 = vmatprep.subr.bf16.mxu0 0
        %1113 = vmatpush1.bf16.msra.mxu0 0
        %1114 = vmatprep.subr.bf16.mxu0 0
        %1115 = vmatpush1.bf16.msra.mxu0 0
        %1116 = vmatprep.subr.bf16.mxu0 0
        %1117 = vmatpush1.bf16.msra.mxu0 0
        %1118 = vmatprep.mubr.bf16.mxu0 0
        %1119 = vmatmul.mubr.bf16.gmra.mrb[0].mxu0 %v1081
        %v1120 = vpop.f32.mrb[0].mxu0
        %v1121 = vadd.f32 0.0, %v1120
        %v1122 = vpop.f32.mrb[0].mxu0
        %v1123 = vpop.f32.mrb[0].mxu0
        %v1124 = vpop.f32.mrb[0].mxu0
        %1125 = vdwg.mxu0
        %v1126 = vadd.f32 %v966, %v1121
        %1127 = vrot.lane.b32.xlu0 %v522, 116
        %v1128 = vpop.permute.xlu0 %1127
        %1129 = vrot.lane.b32.xlu0 %v577, 116
        %v1130 = vpop.permute.xlu0 %1129
        %v1132 = vsel %vm646, %v1128, 0
        %v1135 = vsel %vm646, %v1130, 0
        %1137 = vmatprep.subr.bf16.mxu0 0
        %1138 = vmatpush1.bf16.xpose.msra.mxu0 %v1135
        %1139 = vmatprep.subr.bf16.mxu0 0
        %1140 = vmatpush1.bf16.xpose.msra.mxu0 0
        %1141 = vmatprep.subr.bf16.mxu0 0
        %1142 = vmatpush1.bf16.xpose.msra.mxu0 0
        %1143 = vmatprep.subr.bf16.mxu0 0
        %1144 = vmatpush1.bf16.xpose.msra.mxu0 0
        %1145 = vmatprep.subr.bf16.mxu0 0
        %1146 = vmatpush1.bf16.xpose.msra.mxu0 0
        %1147 = vmatprep.subr.bf16.mxu0 0
        %1148 = vmatpush1.bf16.xpose.msra.mxu0 0
        %1149 = vmatprep.subr.bf16.mxu0 0
        %1150 = vmatpush1.bf16.xpose.msra.mxu0 0
        %1151 = vmatprep.subr.bf16.mxu0 0
        %1152 = vmatpush1.bf16.xpose.msra.mxu0 0
        %1153 = vmatprep.subr.bf16.mxu0 0
        %1154 = vmatpush1.bf16.xpose.msra.mxu0 0
        %1155 = vmatprep.subr.bf16.mxu0 0
        %1156 = vmatpush1.bf16.xpose.msra.mxu0 0
        %1157 = vmatprep.subr.bf16.mxu0 0
        %1158 = vmatpush1.bf16.xpose.msra.mxu0 0
        %1159 = vmatprep.subr.bf16.mxu0 0
        %1160 = vmatpush1.bf16.xpose.msra.mxu0 0
        %1161 = vmatprep.subr.bf16.mxu0 0
        %1162 = vmatpush1.bf16.xpose.msra.mxu0 0
        %1163 = vmatprep.subr.bf16.mxu0 0
        %1164 = vmatpush1.bf16.xpose.msra.mxu0 0
        %1165 = vmatprep.subr.bf16.mxu0 0
        %1166 = vmatpush1.bf16.xpose.msra.mxu0 0
        %1167 = vmatprep.subr.bf16.mxu0 0
        %1168 = vmatpush1.bf16.xpose.msra.mxu0 0
        %1169 = vmatprep.mubr.bf16.mxu0 0
        %1170 = vmatmul.mubr.bf16.gmra.mrb[0].mxu0 %v1132
        %v1171 = vpop.f32.mrb[0].mxu0
        %v1172 = vadd.f32 0.0, %v1171
        %v1173 = vpop.f32.mrb[0].mxu0
        %v1174 = vpop.f32.mrb[0].mxu0
        %v1175 = vpop.f32.mrb[0].mxu0
        %1176 = vdwg.mxu0
        %v1177 = vsel %vm632, -10000.0, %v1172
        %v1178 = vsel %vm694, %v1177, -inf
        %1179 = vmax.xlane.f32.xlu0 %v1178
        %v1180 = vpop.xlane.xlu0 %1179
        %v1181 = vsub.f32 %v1177, %v1180
        %v1182 = vmul.f32 %v1181, 1.442695
        %v1183 = vpow.pop %v1182
        %v1184 = vsel %vm694, %v1183, 0.0
        %1185 = vadd.xlane.f32.xlu0 %v1184
        %v1186 = vpop.xlane.xlu0 %1185
        %v1187 = vrcp.pop %v1186
        %v1188 = vmul.f32 %v1183, %v1187
        %v1189 = vpack.c.bf16 %v1188, %v1188
        %1190 = vrot.lane.b32.xlu0 %v630, 116
        %v1191 = vpop.permute.xlu0 %1190
        %v1193 = vsel %vm694, %v1189, 0
        %v1196 = vsel %vm710, %v1191, 0
        %1198 = vmatprep.subr.bf16.mxu0 0
        %1199 = vmatpush1.bf16.msra.mxu0 %v1196
        %1200 = vmatprep.subr.bf16.mxu0 0
        %1201 = vmatpush1.bf16.msra.mxu0 0
        %1202 = vmatprep.subr.bf16.mxu0 0
        %1203 = vmatpush1.bf16.msra.mxu0 0
        %1204 = vmatprep.subr.bf16.mxu0 0
        %1205 = vmatpush1.bf16.msra.mxu0 0
        %1206 = vmatprep.subr.bf16.mxu0 0
        %1207 = vmatpush1.bf16.msra.mxu0 0
        %1208 = vmatprep.subr.bf16.mxu0 0
        %1209 = vmatpush1.bf16.msra.mxu0 0
        %1210 = vmatprep.subr.bf16.mxu0 0
        %1211 = vmatpush1.bf16.msra.mxu0 0
        %1212 = vmatprep.subr.bf16.mxu0 0
        %1213 = vmatpush1.bf16.msra.mxu0 0
        %1214 = vmatprep.subr.bf16.mxu0 0
        %1215 = vmatpush1.bf16.msra.mxu0 0
        %1216 = vmatprep.subr.bf16.mxu0 0
        %1217 = vmatpush1.bf16.msra.mxu0 0
        %1218 = vmatprep.subr.bf16.mxu0 0
        %1219 = vmatpush1.bf16.msra.mxu0 0
        %1220 = vmatprep.subr.bf16.mxu0 0
        %1221 = vmatpush1.bf16.msra.mxu0 0
        %1222 = vmatprep.subr.bf16.mxu0 0
        %1223 = vmatpush1.bf16.msra.mxu0 0
        %1224 = vmatprep.subr.bf16.mxu0 0
        %1225 = vmatpush1.bf16.msra.mxu0 0
        %1226 = vmatprep.subr.bf16.mxu0 0
        %1227 = vmatpush1.bf16.msra.mxu0 0
        %1228 = vmatprep.subr.bf16.mxu0 0
        %1229 = vmatpush1.bf16.msra.mxu0 0
        %1230 = vmatprep.mubr.bf16.mxu0 0
        %1231 = vmatmul.mubr.bf16.gmra.mrb[0].mxu0 %v1193
        %v1232 = vpop.f32.mrb[0].mxu0
        %v1233 = vadd.f32 0.0, %v1232
        %v1234 = vpop.f32.mrb[0].mxu0
        %v1235 = vpop.f32.mrb[0].mxu0
        %v1236 = vpop.f32.mrb[0].mxu0
        %1237 = vdwg.mxu0
        %v1238 = vpack.c.bf16 %v1233, %v1233
        %v1239 = vrot.slane %v637, 6
        %v1241 = vsel %vm646, %v1238, 0
        %v1244 = vsel %vm758, %v1239, 0
        %1246 = vmatprep.subr.bf16.mxu0 0
        %1247 = vmatpush1.bf16.msra.mxu0 %v1244
        %1248 = vmatprep.subr.bf16.mxu0 0
        %1249 = vmatpush1.bf16.msra.mxu0 0
        %1250 = vmatprep.subr.bf16.mxu0 0
        %1251 = vmatpush1.bf16.msra.mxu0 0
        %1252 = vmatprep.subr.bf16.mxu0 0
        %1253 = vmatpush1.bf16.msra.mxu0 0
        %1254 = vmatprep.subr.bf16.mxu0 0
        %1255 = vmatpush1.bf16.msra.mxu0 0
        %1256 = vmatprep.subr.bf16.mxu0 0
        %1257 = vmatpush1.bf16.msra.mxu0 0
        %1258 = vmatprep.subr.bf16.mxu0 0
        %1259 = vmatpush1.bf16.msra.mxu0 0
        %1260 = vmatprep.subr.bf16.mxu0 0
        %1261 = vmatpush1.bf16.msra.mxu0 0
        %1262 = vmatprep.subr.bf16.mxu0 0
        %1263 = vmatpush1.bf16.msra.mxu0 0
        %1264 = vmatprep.subr.bf16.mxu0 0
        %1265 = vmatpush1.bf16.msra.mxu0 0
        %1266 = vmatprep.subr.bf16.mxu0 0
        %1267 = vmatpush1.bf16.msra.mxu0 0
        %1268 = vmatprep.subr.bf16.mxu0 0
        %1269 = vmatpush1.bf16.msra.mxu0 0
        %1270 = vmatprep.subr.bf16.mxu0 0
        %1271 = vmatpush1.bf16.msra.mxu0 0
        %1272 = vmatprep.subr.bf16.mxu0 0
        %1273 = vmatpush1.bf16.msra.mxu0 0
        %1274 = vmatprep.subr.bf16.mxu0 0
        %1275 = vmatpush1.bf16.msra.mxu0 0
        %1276 = vmatprep.subr.bf16.mxu0 0
        %1277 = vmatpush1.bf16.msra.mxu0 0
        %1278 = vmatprep.mubr.bf16.mxu0 0
        %1279 = vmatmul.mubr.bf16.gmra.mrb[0].mxu0 %v1241
        %v1280 = vpop.f32.mrb[0].mxu0
        %v1281 = vadd.f32 0.0, %v1280
        %v1282 = vpop.f32.mrb[0].mxu0
        %v1283 = vpop.f32.mrb[0].mxu0
        %v1284 = vpop.f32.mrb[0].mxu0
        %1285 = vdwg.mxu0
        %v1286 = vadd.f32 %v1126, %v1281
        %1287 = vrot.lane.b32.xlu0 %v522, 112
        %v1288 = vpop.permute.xlu0 %1287
        %1289 = vrot.lane.b32.xlu0 %v577, 112
        %v1290 = vpop.permute.xlu0 %1289
        %v1292 = vsel %vm646, %v1288, 0
        %v1295 = vsel %vm646, %v1290, 0
        %1297 = vmatprep.subr.bf16.mxu0 0
        %1298 = vmatpush1.bf16.xpose.msra.mxu0 %v1295
        %1299 = vmatprep.subr.bf16.mxu0 0
        %1300 = vmatpush1.bf16.xpose.msra.mxu0 0
        %1301 = vmatprep.subr.bf16.mxu0 0
        %1302 = vmatpush1.bf16.xpose.msra.mxu0 0
        %1303 = vmatprep.subr.bf16.mxu0 0
        %1304 = vmatpush1.bf16.xpose.msra.mxu0 0
        %1305 = vmatprep.subr.bf16.mxu0 0
        %1306 = vmatpush1.bf16.xpose.msra.mxu0 0
        %1307 = vmatprep.subr.bf16.mxu0 0
        %1308 = vmatpush1.bf16.xpose.msra.mxu0 0
        %1309 = vmatprep.subr.bf16.mxu0 0
        %1310 = vmatpush1.bf16.xpose.msra.mxu0 0
        %1311 = vmatprep.subr.bf16.mxu0 0
        %1312 = vmatpush1.bf16.xpose.msra.mxu0 0
        %1313 = vmatprep.subr.bf16.mxu0 0
        %1314 = vmatpush1.bf16.xpose.msra.mxu0 0
        %1315 = vmatprep.subr.bf16.mxu0 0
        %1316 = vmatpush1.bf16.xpose.msra.mxu0 0
        %1317 = vmatprep.subr.bf16.mxu0 0
        %1318 = vmatpush1.bf16.xpose.msra.mxu0 0
        %1319 = vmatprep.subr.bf16.mxu0 0
        %1320 = vmatpush1.bf16.xpose.msra.mxu0 0
        %1321 = vmatprep.subr.bf16.mxu0 0
        %1322 = vmatpush1.bf16.xpose.msra.mxu0 0
        %1323 = vmatprep.subr.bf16.mxu0 0
        %1324 = vmatpush1.bf16.xpose.msra.mxu0 0
        %1325 = vmatprep.subr.bf16.mxu0 0
        %1326 = vmatpush1.bf16.xpose.msra.mxu0 0
        %1327 = vmatprep.subr.bf16.mxu0 0
        %1328 = vmatpush1.bf16.xpose.msra.mxu0 0
        %1329 = vmatprep.mubr.bf16.mxu0 0
        %1330 = vmatmul.mubr.bf16.gmra.mrb[0].mxu0 %v1292
        %v1331 = vpop.f32.mrb[0].mxu0
        %v1332 = vadd.f32 0.0, %v1331
        %v1333 = vpop.f32.mrb[0].mxu0
        %v1334 = vpop.f32.mrb[0].mxu0
        %v1335 = vpop.f32.mrb[0].mxu0
        %1336 = vdwg.mxu0
        %v1337 = vsel %vm632, -10000.0, %v1332
        %v1338 = vsel %vm694, %v1337, -inf
        %1339 = vmax.xlane.f32.xlu0 %v1338
        %v1340 = vpop.xlane.xlu0 %1339
        %v1341 = vsub.f32 %v1337, %v1340
        %v1342 = vmul.f32 %v1341, 1.442695
        %v1343 = vpow.pop %v1342
        %v1344 = vsel %vm694, %v1343, 0.0
        %1345 = vadd.xlane.f32.xlu0 %v1344
        %v1346 = vpop.xlane.xlu0 %1345
        %v1347 = vrcp.pop %v1346
        %v1348 = vmul.f32 %v1343, %v1347
        %v1349 = vpack.c.bf16 %v1348, %v1348
        %1350 = vrot.lane.b32.xlu0 %v630, 112
        %v1351 = vpop.permute.xlu0 %1350
        %v1353 = vsel %vm694, %v1349, 0
        %v1356 = vsel %vm710, %v1351, 0
        %1358 = vmatprep.subr.bf16.mxu0 0
        %1359 = vmatpush1.bf16.msra.mxu0 %v1356
        %1360 = vmatprep.subr.bf16.mxu0 0
        %1361 = vmatpush1.bf16.msra.mxu0 0
        %1362 = vmatprep.subr.bf16.mxu0 0
        %1363 = vmatpush1.bf16.msra.mxu0 0
        %1364 = vmatprep.subr.bf16.mxu0 0
        %1365 = vmatpush1.bf16.msra.mxu0 0
        %1366 = vmatprep.subr.bf16.mxu0 0
        %1367 = vmatpush1.bf16.msra.mxu0 0
        %1368 = vmatprep.subr.bf16.mxu0 0
        %1369 = vmatpush1.bf16.msra.mxu0 0
        %1370 = vmatprep.subr.bf16.mxu0 0
        %1371 = vmatpush1.bf16.msra.mxu0 0
        %1372 = vmatprep.subr.bf16.mxu0 0
        %1373 = vmatpush1.bf16.msra.mxu0 0
        %1374 = vmatprep.subr.bf16.mxu0 0
        %1375 = vmatpush1.bf16.msra.mxu0 0
        %1376 = vmatprep.subr.bf16.mxu0 0
        %1377 = vmatpush1.bf16.msra.mxu0 0
        %1378 = vmatprep.subr.bf16.mxu0 0
        %1379 = vmatpush1.bf16.msra.mxu0 0
        %1380 = vmatprep.subr.bf16.mxu0 0
        %1381 = vmatpush1.bf16.msra.mxu0 0
        %1382 = vmatprep.subr.bf16.mxu0 0
        %1383 = vmatpush1.bf16.msra.mxu0 0
        %1384 = vmatprep.subr.bf16.mxu0 0
        %1385 = vmatpush1.bf16.msra.mxu0 0
        %1386 = vmatprep.subr.bf16.mxu0 0
        %1387 = vmatpush1.bf16.msra.mxu0 0
        %1388 = vmatprep.subr.bf16.mxu0 0
        %1389 = vmatpush1.bf16.msra.mxu0 0
        %1390 = vmatprep.mubr.bf16.mxu0 0
        %1391 = vmatmul.mubr.bf16.gmra.mrb[0].mxu0 %v1353
        %v1392 = vpop.f32.mrb[0].mxu0
        %v1393 = vadd.f32 0.0, %v1392
        %v1394 = vpop.f32.mrb[0].mxu0
        %v1395 = vpop.f32.mrb[0].mxu0
        %v1396 = vpop.f32.mrb[0].mxu0
        %1397 = vdwg.mxu0
        %v1398 = vpack.c.bf16 %v1393, %v1393
        %v1400 = vsel %vm646, %v1398, 0
        %v1403 = vsel %vm758, %v638, 0
        %1405 = vmatprep.subr.bf16.mxu0 0
        %1406 = vmatpush1.bf16.msra.mxu0 %v1403
        %1407 = vmatprep.subr.bf16.mxu0 0
        %1408 = vmatpush1.bf16.msra.mxu0 0
        %1409 = vmatprep.subr.bf16.mxu0 0
        %1410 = vmatpush1.bf16.msra.mxu0 0
        %1411 = vmatprep.subr.bf16.mxu0 0
        %1412 = vmatpush1.bf16.msra.mxu0 0
        %1413 = vmatprep.subr.bf16.mxu0 0
        %1414 = vmatpush1.bf16.msra.mxu0 0
        %1415 = vmatprep.subr.bf16.mxu0 0
        %1416 = vmatpush1.bf16.msra.mxu0 0
        %1417 = vmatprep.subr.bf16.mxu0 0
        %1418 = vmatpush1.bf16.msra.mxu0 0
        %1419 = vmatprep.subr.bf16.mxu0 0
        %1420 = vmatpush1.bf16.msra.mxu0 0
        %1421 = vmatprep.subr.bf16.mxu0 0
        %1422 = vmatpush1.bf16.msra.mxu0 0
        %1423 = vmatprep.subr.bf16.mxu0 0
        %1424 = vmatpush1.bf16.msra.mxu0 0
        %1425 = vmatprep.subr.bf16.mxu0 0
        %1426 = vmatpush1.bf16.msra.mxu0 0
        %1427 = vmatprep.subr.bf16.mxu0 0
        %1428 = vmatpush1.bf16.msra.mxu0 0
        %1429 = vmatprep.subr.bf16.mxu0 0
        %1430 = vmatpush1.bf16.msra.mxu0 0
        %1431 = vmatprep.subr.bf16.mxu0 0
        %1432 = vmatpush1.bf16.msra.mxu0 0
        %1433 = vmatprep.subr.bf16.mxu0 0
        %1434 = vmatpush1.bf16.msra.mxu0 0
        %1435 = vmatprep.subr.bf16.mxu0 0
        %1436 = vmatpush1.bf16.msra.mxu0 0
        %1437 = vmatprep.mubr.bf16.mxu0 0
        %1438 = vmatmul.mubr.bf16.gmra.mrb[0].mxu0 %v1400
        %v1439 = vpop.f32.mrb[0].mxu0
        %v1440 = vadd.f32 0.0, %v1439
        %v1441 = vpop.f32.mrb[0].mxu0
        %v1442 = vpop.f32.mrb[0].mxu0
        %v1443 = vpop.f32.mrb[0].mxu0
        %1444 = vdwg.mxu0
        %v1445 = vadd.f32 %v1286, %v1440
        %1446 = vrot.lane.b32.xlu0 %v522, 108
        %v1447 = vpop.permute.xlu0 %1446
        %1448 = vrot.lane.b32.xlu0 %v577, 108
        %v1449 = vpop.permute.xlu0 %1448
        %v1451 = vsel %vm646, %v1447, 0
        %v1454 = vsel %vm646, %v1449, 0
        %1456 = vmatprep.subr.bf16.mxu0 0
        %1457 = vmatpush1.bf16.xpose.msra.mxu0 %v1454
        %1458 = vmatprep.subr.bf16.mxu0 0
        %1459 = vmatpush1.bf16.xpose.msra.mxu0 0
        %1460 = vmatprep.subr.bf16.mxu0 0
        %1461 = vmatpush1.bf16.xpose.msra.mxu0 0
        %1462 = vmatprep.subr.bf16.mxu0 0
        %1463 = vmatpush1.bf16.xpose.msra.mxu0 0
        %1464 = vmatprep.subr.bf16.mxu0 0
        %1465 = vmatpush1.bf16.xpose.msra.mxu0 0
        %1466 = vmatprep.subr.bf16.mxu0 0
        %1467 = vmatpush1.bf16.xpose.msra.mxu0 0
        %1468 = vmatprep.subr.bf16.mxu0 0
        %1469 = vmatpush1.bf16.xpose.msra.mxu0 0
        %1470 = vmatprep.subr.bf16.mxu0 0
        %1471 = vmatpush1.bf16.xpose.msra.mxu0 0
        %1472 = vmatprep.subr.bf16.mxu0 0
        %1473 = vmatpush1.bf16.xpose.msra.mxu0 0
        %1474 = vmatprep.subr.bf16.mxu0 0
        %1475 = vmatpush1.bf16.xpose.msra.mxu0 0
        %1476 = vmatprep.subr.bf16.mxu0 0
        %1477 = vmatpush1.bf16.xpose.msra.mxu0 0
        %1478 = vmatprep.subr.bf16.mxu0 0
        %1479 = vmatpush1.bf16.xpose.msra.mxu0 0
        %1480 = vmatprep.subr.bf16.mxu0 0
        %1481 = vmatpush1.bf16.xpose.msra.mxu0 0
        %1482 = vmatprep.subr.bf16.mxu0 0
        %1483 = vmatpush1.bf16.xpose.msra.mxu0 0
        %1484 = vmatprep.subr.bf16.mxu0 0
        %1485 = vmatpush1.bf16.xpose.msra.mxu0 0
        %1486 = vmatprep.subr.bf16.mxu0 0
        %1487 = vmatpush1.bf16.xpose.msra.mxu0 0
        %1488 = vmatprep.mubr.bf16.mxu0 0
        %1489 = vmatmul.mubr.bf16.gmra.mrb[0].mxu0 %v1451
        %v1490 = vpop.f32.mrb[0].mxu0
        %v1491 = vadd.f32 0.0, %v1490
        %v1492 = vpop.f32.mrb[0].mxu0
        %v1493 = vpop.f32.mrb[0].mxu0
        %v1494 = vpop.f32.mrb[0].mxu0
        %1495 = vdwg.mxu0
        %v1496 = vsel %vm632, -10000.0, %v1491
        %v1497 = vsel %vm694, %v1496, -inf
        %1498 = vmax.xlane.f32.xlu0 %v1497
        %v1499 = vpop.xlane.xlu0 %1498
        %v1500 = vsub.f32 %v1496, %v1499
        %v1501 = vmul.f32 %v1500, 1.442695
        %v1502 = vpow.pop %v1501
        %v1503 = vsel %vm694, %v1502, 0.0
        %1504 = vadd.xlane.f32.xlu0 %v1503
        %v1505 = vpop.xlane.xlu0 %1504
        %v1506 = vrcp.pop %v1505
        %v1507 = vmul.f32 %v1502, %v1506
        %v1508 = vpack.c.bf16 %v1507, %v1507
        %1509 = vrot.lane.b32.xlu0 %v630, 108
        %v1510 = vpop.permute.xlu0 %1509
        %v1512 = vsel %vm694, %v1508, 0
        %v1515 = vsel %vm710, %v1510, 0
        %1517 = vmatprep.subr.bf16.mxu0 0
        %1518 = vmatpush1.bf16.msra.mxu0 %v1515
        %1519 = vmatprep.subr.bf16.mxu0 0
        %1520 = vmatpush1.bf16.msra.mxu0 0
        %1521 = vmatprep.subr.bf16.mxu0 0
        %1522 = vmatpush1.bf16.msra.mxu0 0
        %1523 = vmatprep.subr.bf16.mxu0 0
        %1524 = vmatpush1.bf16.msra.mxu0 0
        %1525 = vmatprep.subr.bf16.mxu0 0
        %1526 = vmatpush1.bf16.msra.mxu0 0
        %1527 = vmatprep.subr.bf16.mxu0 0
        %1528 = vmatpush1.bf16.msra.mxu0 0
        %1529 = vmatprep.subr.bf16.mxu0 0
        %1530 = vmatpush1.bf16.msra.mxu0 0
        %1531 = vmatprep.subr.bf16.mxu0 0
        %1532 = vmatpush1.bf16.msra.mxu0 0
        %1533 = vmatprep.subr.bf16.mxu0 0
        %1534 = vmatpush1.bf16.msra.mxu0 0
        %1535 = vmatprep.subr.bf16.mxu0 0
        %1536 = vmatpush1.bf16.msra.mxu0 0
        %1537 = vmatprep.subr.bf16.mxu0 0
        %1538 = vmatpush1.bf16.msra.mxu0 0
        %1539 = vmatprep.subr.bf16.mxu0 0
        %1540 = vmatpush1.bf16.msra.mxu0 0
        %1541 = vmatprep.subr.bf16.mxu0 0
        %1542 = vmatpush1.bf16.msra.mxu0 0
        %1543 = vmatprep.subr.bf16.mxu0 0
        %1544 = vmatpush1.bf16.msra.mxu0 0
        %1545 = vmatprep.subr.bf16.mxu0 0
        %1546 = vmatpush1.bf16.msra.mxu0 0
        %1547 = vmatprep.subr.bf16.mxu0 0
        %1548 = vmatpush1.bf16.msra.mxu0 0
        %1549 = vmatprep.mubr.bf16.mxu0 0
        %1550 = vmatmul.mubr.bf16.gmra.mrb[0].mxu0 %v1512
        %v1551 = vpop.f32.mrb[0].mxu0
        %v1552 = vadd.f32 0.0, %v1551
        %v1553 = vpop.f32.mrb[0].mxu0
        %v1554 = vpop.f32.mrb[0].mxu0
        %v1555 = vpop.f32.mrb[0].mxu0
        %1556 = vdwg.mxu0
        %v1557 = vpack.c.bf16 %v1552, %v1552
        %v1559 = vrot.slane %v638, 2
        %v1561 = vsel %vm646, %v1557, 0
        %v1564 = vsel %vm758, %v1559, 0
        %1566 = vmatprep.subr.bf16.mxu0 0
        %1567 = vmatpush1.bf16.msra.mxu0 %v1564
        %1568 = vmatprep.subr.bf16.mxu0 0
        %1569 = vmatpush1.bf16.msra.mxu0 0
        %1570 = vmatprep.subr.bf16.mxu0 0
        %1571 = vmatpush1.bf16.msra.mxu0 0
        %1572 = vmatprep.subr.bf16.mxu0 0
        %1573 = vmatpush1.bf16.msra.mxu0 0
        %1574 = vmatprep.subr.bf16.mxu0 0
        %1575 = vmatpush1.bf16.msra.mxu0 0
        %1576 = vmatprep.subr.bf16.mxu0 0
        %1577 = vmatpush1.bf16.msra.mxu0 0
        %1578 = vmatprep.subr.bf16.mxu0 0
        %1579 = vmatpush1.bf16.msra.mxu0 0
        %1580 = vmatprep.subr.bf16.mxu0 0
        %1581 = vmatpush1.bf16.msra.mxu0 0
        %1582 = vmatprep.subr.bf16.mxu0 0
        %1583 = vmatpush1.bf16.msra.mxu0 0
        %1584 = vmatprep.subr.bf16.mxu0 0
        %1585 = vmatpush1.bf16.msra.mxu0 0
        %1586 = vmatprep.subr.bf16.mxu0 0
        %1587 = vmatpush1.bf16.msra.mxu0 0
        %1588 = vmatprep.subr.bf16.mxu0 0
        %1589 = vmatpush1.bf16.msra.mxu0 0
        %1590 = vmatprep.subr.bf16.mxu0 0
        %1591 = vmatpush1.bf16.msra.mxu0 0
        %1592 = vmatprep.subr.bf16.mxu0 0
        %1593 = vmatpush1.bf16.msra.mxu0 0
        %1594 = vmatprep.subr.bf16.mxu0 0
        %1595 = vmatpush1.bf16.msra.mxu0 0
        %1596 = vmatprep.subr.bf16.mxu0 0
        %1597 = vmatpush1.bf16.msra.mxu0 0
        %1598 = vmatprep.mubr.bf16.mxu0 0
        %1599 = vmatmul.mubr.bf16.gmra.mrb[0].mxu0 %v1561
        %v1600 = vpop.f32.mrb[0].mxu0
        %v1601 = vadd.f32 0.0, %v1600
        %v1602 = vpop.f32.mrb[0].mxu0
        %v1603 = vpop.f32.mrb[0].mxu0
        %v1604 = vpop.f32.mrb[0].mxu0
        %1605 = vdwg.mxu0
        %v1606 = vadd.f32 %v1445, %v1601
        %1607 = vrot.lane.b32.xlu0 %v522, 104
        %v1608 = vpop.permute.xlu0 %1607
        %1609 = vrot.lane.b32.xlu0 %v577, 104
        %v1610 = vpop.permute.xlu0 %1609
        %v1612 = vsel %vm646, %v1608, 0
        %v1615 = vsel %vm646, %v1610, 0
        %1617 = vmatprep.subr.bf16.mxu0 0
        %1618 = vmatpush1.bf16.xpose.msra.mxu0 %v1615
        %1619 = vmatprep.subr.bf16.mxu0 0
        %1620 = vmatpush1.bf16.xpose.msra.mxu0 0
        %1621 = vmatprep.subr.bf16.mxu0 0
        %1622 = vmatpush1.bf16.xpose.msra.mxu0 0
        %1623 = vmatprep.subr.bf16.mxu0 0
        %1624 = vmatpush1.bf16.xpose.msra.mxu0 0
        %1625 = vmatprep.subr.bf16.mxu0 0
        %1626 = vmatpush1.bf16.xpose.msra.mxu0 0
        %1627 = vmatprep.subr.bf16.mxu0 0
        %1628 = vmatpush1.bf16.xpose.msra.mxu0 0
        %1629 = vmatprep.subr.bf16.mxu0 0
        %1630 = vmatpush1.bf16.xpose.msra.mxu0 0
        %1631 = vmatprep.subr.bf16.mxu0 0
        %1632 = vmatpush1.bf16.xpose.msra.mxu0 0
        %1633 = vmatprep.subr.bf16.mxu0 0
        %1634 = vmatpush1.bf16.xpose.msra.mxu0 0
        %1635 = vmatprep.subr.bf16.mxu0 0
        %1636 = vmatpush1.bf16.xpose.msra.mxu0 0
        %1637 = vmatprep.subr.bf16.mxu0 0
        %1638 = vmatpush1.bf16.xpose.msra.mxu0 0
        %1639 = vmatprep.subr.bf16.mxu0 0
        %1640 = vmatpush1.bf16.xpose.msra.mxu0 0
        %1641 = vmatprep.subr.bf16.mxu0 0
        %1642 = vmatpush1.bf16.xpose.msra.mxu0 0
        %1643 = vmatprep.subr.bf16.mxu0 0
        %1644 = vmatpush1.bf16.xpose.msra.mxu0 0
        %1645 = vmatprep.subr.bf16.mxu0 0
        %1646 = vmatpush1.bf16.xpose.msra.mxu0 0
        %1647 = vmatprep.subr.bf16.mxu0 0
        %1648 = vmatpush1.bf16.xpose.msra.mxu0 0
        %1649 = vmatprep.mubr.bf16.mxu0 0
        %1650 = vmatmul.mubr.bf16.gmra.mrb[0].mxu0 %v1612
        %v1651 = vpop.f32.mrb[0].mxu0
        %v1652 = vadd.f32 0.0, %v1651
        %v1653 = vpop.f32.mrb[0].mxu0
        %v1654 = vpop.f32.mrb[0].mxu0
        %v1655 = vpop.f32.mrb[0].mxu0
        %1656 = vdwg.mxu0
        %v1657 = vsel %vm632, -10000.0, %v1652
        %v1658 = vsel %vm694, %v1657, -inf
        %1659 = vmax.xlane.f32.xlu0 %v1658
        %v1660 = vpop.xlane.xlu0 %1659
        %v1661 = vsub.f32 %v1657, %v1660
        %v1662 = vmul.f32 %v1661, 1.442695
        %v1663 = vpow.pop %v1662
        %v1664 = vsel %vm694, %v1663, 0.0
        %1665 = vadd.xlane.f32.xlu0 %v1664
        %v1666 = vpop.xlane.xlu0 %1665
        %v1667 = vrcp.pop %v1666
        %v1668 = vmul.f32 %v1663, %v1667
        %v1669 = vpack.c.bf16 %v1668, %v1668
        %1670 = vrot.lane.b32.xlu0 %v630, 104
        %v1671 = vpop.permute.xlu0 %1670
        %v1673 = vsel %vm694, %v1669, 0
        %v1676 = vsel %vm710, %v1671, 0
        %1678 = vmatprep.subr.bf16.mxu0 0
        %1679 = vmatpush1.bf16.msra.mxu0 %v1676
        %1680 = vmatprep.subr.bf16.mxu0 0
        %1681 = vmatpush1.bf16.msra.mxu0 0
        %1682 = vmatprep.subr.bf16.mxu0 0
        %1683 = vmatpush1.bf16.msra.mxu0 0
        %1684 = vmatprep.subr.bf16.mxu0 0
        %1685 = vmatpush1.bf16.msra.mxu0 0
        %1686 = vmatprep.subr.bf16.mxu0 0
        %1687 = vmatpush1.bf16.msra.mxu0 0
        %1688 = vmatprep.subr.bf16.mxu0 0
        %1689 = vmatpush1.bf16.msra.mxu0 0
        %1690 = vmatprep.subr.bf16.mxu0 0
        %1691 = vmatpush1.bf16.msra.mxu0 0
        %1692 = vmatprep.subr.bf16.mxu0 0
        %1693 = vmatpush1.bf16.msra.mxu0 0
        %1694 = vmatprep.subr.bf16.mxu0 0
        %1695 = vmatpush1.bf16.msra.mxu0 0
        %1696 = vmatprep.subr.bf16.mxu0 0
        %1697 = vmatpush1.bf16.msra.mxu0 0
        %1698 = vmatprep.subr.bf16.mxu0 0
        %1699 = vmatpush1.bf16.msra.mxu0 0
        %1700 = vmatprep.subr.bf16.mxu0 0
        %1701 = vmatpush1.bf16.msra.mxu0 0
        %1702 = vmatprep.subr.bf16.mxu0 0
        %1703 = vmatpush1.bf16.msra.mxu0 0
        %1704 = vmatprep.subr.bf16.mxu0 0
        %1705 = vmatpush1.bf16.msra.mxu0 0
        %1706 = vmatprep.subr.bf16.mxu0 0
        %1707 = vmatpush1.bf16.msra.mxu0 0
        %1708 = vmatprep.subr.bf16.mxu0 0
        %1709 = vmatpush1.bf16.msra.mxu0 0
        %1710 = vmatprep.mubr.bf16.mxu0 0
        %1711 = vmatmul.mubr.bf16.gmra.mrb[0].mxu0 %v1673
        %v1712 = vpop.f32.mrb[0].mxu0
        %v1713 = vadd.f32 0.0, %v1712
        %v1714 = vpop.f32.mrb[0].mxu0
        %v1715 = vpop.f32.mrb[0].mxu0
        %v1716 = vpop.f32.mrb[0].mxu0
        %1717 = vdwg.mxu0
        %v1718 = vpack.c.bf16 %v1713, %v1713
        %v1719 = vrot.slane %v638, 4
        %v1721 = vsel %vm646, %v1718, 0
        %v1724 = vsel %vm758, %v1719, 0
        %1726 = vmatprep.subr.bf16.mxu0 0
        %1727 = vmatpush1.bf16.msra.mxu0 %v1724
        %1728 = vmatprep.subr.bf16.mxu0 0
        %1729 = vmatpush1.bf16.msra.mxu0 0
        %1730 = vmatprep.subr.bf16.mxu0 0
        %1731 = vmatpush1.bf16.msra.mxu0 0
        %1732 = vmatprep.subr.bf16.mxu0 0
        %1733 = vmatpush1.bf16.msra.mxu0 0
        %1734 = vmatprep.subr.bf16.mxu0 0
        %1735 = vmatpush1.bf16.msra.mxu0 0
        %1736 = vmatprep.subr.bf16.mxu0 0
        %1737 = vmatpush1.bf16.msra.mxu0 0
        %1738 = vmatprep.subr.bf16.mxu0 0
        %1739 = vmatpush1.bf16.msra.mxu0 0
        %1740 = vmatprep.subr.bf16.mxu0 0
        %1741 = vmatpush1.bf16.msra.mxu0 0
        %1742 = vmatprep.subr.bf16.mxu0 0
        %1743 = vmatpush1.bf16.msra.mxu0 0
        %1744 = vmatprep.subr.bf16.mxu0 0
        %1745 = vmatpush1.bf16.msra.mxu0 0
        %1746 = vmatprep.subr.bf16.mxu0 0
        %1747 = vmatpush1.bf16.msra.mxu0 0
        %1748 = vmatprep.subr.bf16.mxu0 0
        %1749 = vmatpush1.bf16.msra.mxu0 0
        %1750 = vmatprep.subr.bf16.mxu0 0
        %1751 = vmatpush1.bf16.msra.mxu0 0
        %1752 = vmatprep.subr.bf16.mxu0 0
        %1753 = vmatpush1.bf16.msra.mxu0 0
        %1754 = vmatprep.subr.bf16.mxu0 0
        %1755 = vmatpush1.bf16.msra.mxu0 0
        %1756 = vmatprep.subr.bf16.mxu0 0
        %1757 = vmatpush1.bf16.msra.mxu0 0
        %1758 = vmatprep.mubr.bf16.mxu0 0
        %1759 = vmatmul.mubr.bf16.gmra.mrb[0].mxu0 %v1721
        %v1760 = vpop.f32.mrb[0].mxu0
        %v1761 = vadd.f32 0.0, %v1760
        %v1762 = vpop.f32.mrb[0].mxu0
        %v1763 = vpop.f32.mrb[0].mxu0
        %v1764 = vpop.f32.mrb[0].mxu0
        %1765 = vdwg.mxu0
        %v1766 = vadd.f32 %v1606, %v1761
        %1767 = vrot.lane.b32.xlu0 %v522, 100
        %v1768 = vpop.permute.xlu0 %1767
        %1769 = vrot.lane.b32.xlu0 %v577, 100
        %v1770 = vpop.permute.xlu0 %1769
        %v1772 = vsel %vm646, %v1768, 0
        %v1775 = vsel %vm646, %v1770, 0
        %1777 = vmatprep.subr.bf16.mxu0 0
        %1778 = vmatpush1.bf16.xpose.msra.mxu0 %v1775
        %1779 = vmatprep.subr.bf16.mxu0 0
        %1780 = vmatpush1.bf16.xpose.msra.mxu0 0
        %1781 = vmatprep.subr.bf16.mxu0 0
        %1782 = vmatpush1.bf16.xpose.msra.mxu0 0
        %1783 = vmatprep.subr.bf16.mxu0 0
        %1784 = vmatpush1.bf16.xpose.msra.mxu0 0
        %1785 = vmatprep.subr.bf16.mxu0 0
        %1786 = vmatpush1.bf16.xpose.msra.mxu0 0
        %1787 = vmatprep.subr.bf16.mxu0 0
        %1788 = vmatpush1.bf16.xpose.msra.mxu0 0
        %1789 = vmatprep.subr.bf16.mxu0 0
        %1790 = vmatpush1.bf16.xpose.msra.mxu0 0
        %1791 = vmatprep.subr.bf16.mxu0 0
        %1792 = vmatpush1.bf16.xpose.msra.mxu0 0
        %1793 = vmatprep.subr.bf16.mxu0 0
        %1794 = vmatpush1.bf16.xpose.msra.mxu0 0
        %1795 = vmatprep.subr.bf16.mxu0 0
        %1796 = vmatpush1.bf16.xpose.msra.mxu0 0
        %1797 = vmatprep.subr.bf16.mxu0 0
        %1798 = vmatpush1.bf16.xpose.msra.mxu0 0
        %1799 = vmatprep.subr.bf16.mxu0 0
        %1800 = vmatpush1.bf16.xpose.msra.mxu0 0
        %1801 = vmatprep.subr.bf16.mxu0 0
        %1802 = vmatpush1.bf16.xpose.msra.mxu0 0
        %1803 = vmatprep.subr.bf16.mxu0 0
        %1804 = vmatpush1.bf16.xpose.msra.mxu0 0
        %1805 = vmatprep.subr.bf16.mxu0 0
        %1806 = vmatpush1.bf16.xpose.msra.mxu0 0
        %1807 = vmatprep.subr.bf16.mxu0 0
        %1808 = vmatpush1.bf16.xpose.msra.mxu0 0
        %1809 = vmatprep.mubr.bf16.mxu0 0
        %1810 = vmatmul.mubr.bf16.gmra.mrb[0].mxu0 %v1772
        %v1811 = vpop.f32.mrb[0].mxu0
        %v1812 = vadd.f32 0.0, %v1811
        %v1813 = vpop.f32.mrb[0].mxu0
        %v1814 = vpop.f32.mrb[0].mxu0
        %v1815 = vpop.f32.mrb[0].mxu0
        %1816 = vdwg.mxu0
        %v1817 = vsel %vm632, -10000.0, %v1812
        %v1818 = vsel %vm694, %v1817, -inf
        %1819 = vmax.xlane.f32.xlu0 %v1818
        %v1820 = vpop.xlane.xlu0 %1819
        %v1821 = vsub.f32 %v1817, %v1820
        %v1822 = vmul.f32 %v1821, 1.442695
        %v1823 = vpow.pop %v1822
        %v1824 = vsel %vm694, %v1823, 0.0
        %1825 = vadd.xlane.f32.xlu0 %v1824
        %v1826 = vpop.xlane.xlu0 %1825
        %v1827 = vrcp.pop %v1826
        %v1828 = vmul.f32 %v1823, %v1827
        %v1829 = vpack.c.bf16 %v1828, %v1828
        %1830 = vrot.lane.b32.xlu0 %v630, 100
        %v1831 = vpop.permute.xlu0 %1830
        %v1833 = vsel %vm694, %v1829, 0
        %v1836 = vsel %vm710, %v1831, 0
        %1838 = vmatprep.subr.bf16.mxu0 0
        %1839 = vmatpush1.bf16.msra.mxu0 %v1836
        %1840 = vmatprep.subr.bf16.mxu0 0
        %1841 = vmatpush1.bf16.msra.mxu0 0
        %1842 = vmatprep.subr.bf16.mxu0 0
        %1843 = vmatpush1.bf16.msra.mxu0 0
        %1844 = vmatprep.subr.bf16.mxu0 0
        %1845 = vmatpush1.bf16.msra.mxu0 0
        %1846 = vmatprep.subr.bf16.mxu0 0
        %1847 = vmatpush1.bf16.msra.mxu0 0
        %1848 = vmatprep.subr.bf16.mxu0 0
        %1849 = vmatpush1.bf16.msra.mxu0 0
        %1850 = vmatprep.subr.bf16.mxu0 0
        %1851 = vmatpush1.bf16.msra.mxu0 0
        %1852 = vmatprep.subr.bf16.mxu0 0
        %1853 = vmatpush1.bf16.msra.mxu0 0
        %1854 = vmatprep.subr.bf16.mxu0 0
        %1855 = vmatpush1.bf16.msra.mxu0 0
        %1856 = vmatprep.subr.bf16.mxu0 0
        %1857 = vmatpush1.bf16.msra.mxu0 0
        %1858 = vmatprep.subr.bf16.mxu0 0
        %1859 = vmatpush1.bf16.msra.mxu0 0
        %1860 = vmatprep.subr.bf16.mxu0 0
        %1861 = vmatpush1.bf16.msra.mxu0 0
        %1862 = vmatprep.subr.bf16.mxu0 0
        %1863 = vmatpush1.bf16.msra.mxu0 0
        %1864 = vmatprep.subr.bf16.mxu0 0
        %1865 = vmatpush1.bf16.msra.mxu0 0
        %1866 = vmatprep.subr.bf16.mxu0 0
        %1867 = vmatpush1.bf16.msra.mxu0 0
        %1868 = vmatprep.subr.bf16.mxu0 0
        %1869 = vmatpush1.bf16.msra.mxu0 0
        %1870 = vmatprep.mubr.bf16.mxu0 0
        %1871 = vmatmul.mubr.bf16.gmra.mrb[0].mxu0 %v1833
        %v1872 = vpop.f32.mrb[0].mxu0
        %v1873 = vadd.f32 0.0, %v1872
        %v1874 = vpop.f32.mrb[0].mxu0
        %v1875 = vpop.f32.mrb[0].mxu0
        %v1876 = vpop.f32.mrb[0].mxu0
        %1877 = vdwg.mxu0
        %v1878 = vpack.c.bf16 %v1873, %v1873
        %v1879 = vrot.slane %v638, 6
        %v1881 = vsel %vm646, %v1878, 0
        %v1884 = vsel %vm758, %v1879, 0
        %1886 = vmatprep.subr.bf16.mxu0 0
        %1887 = vmatpush1.bf16.msra.mxu0 %v1884
        %1888 = vmatprep.subr.bf16.mxu0 0
        %1889 = vmatpush1.bf16.msra.mxu0 0
        %1890 = vmatprep.subr.bf16.mxu0 0
        %1891 = vmatpush1.bf16.msra.mxu0 0
        %1892 = vmatprep.subr.bf16.mxu0 0
        %1893 = vmatpush1.bf16.msra.mxu0 0
        %1894 = vmatprep.subr.bf16.mxu0 0
        %1895 = vmatpush1.bf16.msra.mxu0 0
        %1896 = vmatprep.subr.bf16.mxu0 0
        %1897 = vmatpush1.bf16.msra.mxu0 0
        %1898 = vmatprep.subr.bf16.mxu0 0
        %1899 = vmatpush1.bf16.msra.mxu0 0
        %1900 = vmatprep.subr.bf16.mxu0 0
        %1901 = vmatpush1.bf16.msra.mxu0 0
        %1902 = vmatprep.subr.bf16.mxu0 0
        %1903 = vmatpush1.bf16.msra.mxu0 0
        %1904 = vmatprep.subr.bf16.mxu0 0
        %1905 = vmatpush1.bf16.msra.mxu0 0
        %1906 = vmatprep.subr.bf16.mxu0 0
        %1907 = vmatpush1.bf16.msra.mxu0 0
        %1908 = vmatprep.subr.bf16.mxu0 0
        %1909 = vmatpush1.bf16.msra.mxu0 0
        %1910 = vmatprep.subr.bf16.mxu0 0
        %1911 = vmatpush1.bf16.msra.mxu0 0
        %1912 = vmatprep.subr.bf16.mxu0 0
        %1913 = vmatpush1.bf16.msra.mxu0 0
        %1914 = vmatprep.subr.bf16.mxu0 0
        %1915 = vmatpush1.bf16.msra.mxu0 0
        %1916 = vmatprep.subr.bf16.mxu0 0
        %1917 = vmatpush1.bf16.msra.mxu0 0
        %1918 = vmatprep.mubr.bf16.mxu0 0
        %1919 = vmatmul.mubr.bf16.gmra.mrb[0].mxu0 %v1881
        %v1920 = vpop.f32.mrb[0].mxu0
        %v1921 = vadd.f32 0.0, %v1920
        %v1922 = vpop.f32.mrb[0].mxu0
        %v1923 = vpop.f32.mrb[0].mxu0
        %v1924 = vpop.f32.mrb[0].mxu0
        %1925 = vdwg.mxu0
        %v1926 = vadd.f32 %v1766, %v1921
        %1927 = vst.msk [vmem:[%s457] sm:$0xff] %vm478, %v1926
        %s1928 = sand.u32 %s228, 1
        %s1929 = scalar_lea.sflag [#allocation4], %s1928
        %s1930 = sand.u32 %s228, 1
        %s1931 = smul.addr %s1930, 8
        %s1932 = scalar_lea.vmem [#allocation13], %s1931
        // Predicated region
        $region77: #{tpu_custom_call.1} parent=51 // pred_check
          %p1933 = pneg %p238
        $region78: #{tpu_custom_call.1} parent=51 // pred_check_branch
          %1935 = sbr.rel (%p1933) target = $region80
        $region79: #{tpu_custom_call.1} parent=51 // pred_region
          %s1937 = ssub.s32 128, 128
          %1938 = vsyncadd %s1929, %s1937
          %s1939 = smul.addr %s32, 128
          %s1940 = scalar_lea.hbm %s8, %s1939
          %s1942 = sshll.u32 %s1932, 4
          %s1943 = int_to_ptr.vmem [resolvable:$true] %s1942
          %1945 = dma.vmem_to_hbm [thread:$0]  %s1943, 128, %s1940, %s1929
        $region80: #{tpu_custom_call.1} parent=51 // pred_fallthru
          _
      $region52: #{tpu_custom_call.1} parent=5 // pred_fallthru
        _
      %p1946 = scmp.le.s32.totalorder 2, %s27
      // Predicated region
      $region81: #{tpu_custom_call.1} parent=5 // pred_check
        %p1947 = pneg %p1946
      $region82: #{tpu_custom_call.1} parent=5 // pred_check_branch
        %1949 = sbr.rel (%p1947) target = $region84
      $region83: #{tpu_custom_call.1} parent=5 // pred_region
        %s1950 = ssub.s32 %s27, 2
        // Predicated region
        $region85: #{tpu_custom_call.1} parent=83 // pred_check
          %p1951 = pneg %p244
        $region86: #{tpu_custom_call.1} parent=83 // pred_check_branch
          %1953 = sbr.rel (%p1951) target = $region88
        $region87: #{tpu_custom_call.1} parent=83 // pred_region
          %s1954 = sand.u32 %s229, 1
          %s1955 = scalar_lea.sflag [#allocation4], %s1954
          %s1956 = sand.u32 %s229, 1
          %s1957 = smul.addr %s1956, 8
          %s1958 = scalar_lea.vmem [#allocation13], %s1957
          %1959 = dma.done %s1955, 128
        $region88: #{tpu_custom_call.1} parent=83 // pred_fallthru
          _
      $region84: #{tpu_custom_call.1} parent=5 // pred_fallthru
        _
    $region6: #{tpu_custom_call.1} parent=1 // loop_footer
      %s31 = sadd.s32 1, %s27
    $region7: #{tpu_custom_call.1} parent=1 // loop_footer_branch
      %26 = sbr.rel target = $region3
    $region8: #{tpu_custom_call.1} parent=1 // loop_exit
      _
    %1960 = vsyncpa [#allocation3], 1
    %s1961 = scalar_lea.sflag [#allocation3], 1
    %1962 = vsyncpa %s1961, 1
    %1963 = vsyncpa [#allocation6], 1
    %s1964 = scalar_lea.sflag [#allocation6], 1
    %1965 = vsyncpa %s1964, 1
    %1966 = vsyncpa [#allocation9], 1
    %s1967 = scalar_lea.sflag [#allocation9], 1
    %1968 = vsyncpa %s1967, 1
    %1969 = vsyncpa [#allocation12], 1
    %1970 = vsyncpa [#allocation4], 1
    %s1971 = scalar_lea.sflag [#allocation4], 1
    %1972 = vsyncpa %s1971, 1

</llo_original>
